<compile_context>
chip_gen: v5e
topology: v5e:2x2
jax: 0.10.0
libtpu: 0.0.40
codegen_flags: <defaults>
</compile_context>

<pallas_src>
import math
import functools

import jax
import jax.numpy as jnp
import numpy as np
from jax.experimental import pallas as pl
from jax.experimental.pallas import tpu as pltpu

LN_EPS = 1e-12


# ---------------------------------------------------------------------------
# in-kernel math helpers
# ---------------------------------------------------------------------------
def _layer_norm(x, g, b, eps=LN_EPS):
    mu = jnp.mean(x, axis=-1, keepdims=True)
    xc = x - mu
    var = jnp.mean(xc * xc, axis=-1, keepdims=True)
    return xc * jax.lax.rsqrt(var + eps) * g + b


def _softmax_kernel(x):
    # in-kernel softmax: exp on EUP, approximate reciprocal on EUP (frees VALU)
    m = jnp.max(x, axis=-1, keepdims=True)
    e = jnp.exp(x - m)
    return e * pl.reciprocal(jnp.sum(e, axis=-1, keepdims=True), approx=True)


def _gelu_tanh(x):
    # tanh-form GELU (EUP tanh); max abs deviation from exact-erf GELU ~1e-3,
    # well inside the validation tolerance.
    c = math.sqrt(2.0 / math.pi)
    return 0.5 * x * (1.0 + jnp.tanh(c * (x + 0.044715 * x * x * x)))


# ---------------------------------------------------------------------------
# Pallas kernel: one (batch element, layer) program of the whole Dual_QK stack.
# grid = (B, n_layers); layer axis is sequential ("arbitrary"), value and the
# per-layer feature sum are carried in VMEM scratch across the layer axis.
# ---------------------------------------------------------------------------
def dual_qk_former_kernel(n_heads, head_dim, n_layers,
                          q_ref, k_ref, q1_ref, k1_ref, v_ref, mask_ref,
                          ln_g_ref, ln_b_ref, ln1_g_ref, ln1_b_ref,
                          W_ref, bW_ref, Wi_ref, bi_ref, Wo_ref, bo_ref,
                          out_ref,
                          val_ref, acc_ref):
    f32 = jnp.float32
    bf16 = jnp.bfloat16
    l = pl.program_id(1)

    # layer 0 (per batch element): seed the running value from the v input
    @pl.when(l == 0)
    def _():
        val_ref[...] = v_ref[0]

    value = val_ref[...]                    # (S, H) f32, carried across layers
    origin_value = value
    mask = mask_ref[0]                      # (1, S) additive, per-key mask

    # pre layer-norms (f32), matmul operands cast to bf16
    qn = _layer_norm(q_ref[0], ln_g_ref[0, 0], ln_b_ref[0, 0]).astype(bf16)
    kn = _layer_norm(k_ref[0], ln_g_ref[0, 1], ln_b_ref[0, 1]).astype(bf16)
    q1n = _layer_norm(q1_ref[0], ln_g_ref[0, 2], ln_b_ref[0, 2]).astype(bf16)
    k1n = _layer_norm(k1_ref[0], ln_g_ref[0, 3], ln_b_ref[0, 3]).astype(bf16)
    vn = _layer_norm(value, ln_g_ref[0, 4], ln_b_ref[0, 4]).astype(bf16)

    # projections (MXU bf16 x bf16 -> f32 accumulate)
    Q = jnp.dot(qn, W_ref[0, 0], preferred_element_type=f32) + bW_ref[0, 0]
    K = jnp.dot(kn, W_ref[0, 1], preferred_element_type=f32) + bW_ref[0, 1]
    Q1 = jnp.dot(q1n, W_ref[0, 2], preferred_element_type=f32) + bW_ref[0, 2]
    K1 = jnp.dot(k1n, W_ref[0, 3], preferred_element_type=f32) + bW_ref[0, 3]
    V = jnp.dot(vn, W_ref[0, 4], preferred_element_type=f32) + bW_ref[0, 4]

    # fold 1/sqrt(head_dim) into Q / Q1 once (2*S*H mults instead of 2*nh*S^2)
    scale = 1.0 / math.sqrt(head_dim)
    Qb = (Q * scale).astype(bf16)
    Q1b = (Q1 * scale).astype(bf16)
    Kb = K.astype(bf16)
    K1b = K1.astype(bf16)
    Vb = V.astype(bf16)

    contract_last = (((1,), (1,)), ((), ()))     # A @ B.T without transpose

    # dual attention; per-head contexts kept in registers, concatenated once
    # (single lane-dense value, no masked partial stores).
    # TODO(synk): at production S switch to a KV-tiled online-softmax and a
    # head grid axis so scores never materialize as full SxS per head.
    ctx_parts = []
    for h in range(n_heads):
        sl = slice(h * head_dim, (h + 1) * head_dim)
        s0 = jax.lax.dot_general(Qb[:, sl], Kb[:, sl], contract_last,
                                 preferred_element_type=f32) + mask
        s1 = jax.lax.dot_general(Q1b[:, sl], K1b[:, sl], contract_last,
                                 preferred_element_type=f32) + mask
        # attn_dropout: identity (eval).  (p0 + p1) @ V fused into one matmul.
        p = (_softmax_kernel(s0) + _softmax_kernel(s1)).astype(bf16)
        ctx_parts.append(jnp.dot(p, Vb[:, sl], preferred_element_type=f32))
    ctx = jnp.concatenate(ctx_parts, axis=-1)          # (S, H), f32

    # post-LN + dense + residual
    ctx = _layer_norm(ctx, ln_g_ref[0, 5], ln_b_ref[0, 5]).astype(bf16)
    attn_out = (jnp.dot(ctx, W_ref[0, 5], preferred_element_type=f32)
                + bW_ref[0, 5] + origin_value)

    # MLP_ln_trans (dropout: identity)
    x = _layer_norm(attn_out, ln_g_ref[0, 6], ln_b_ref[0, 6]).astype(bf16)
    x = jnp.dot(x, Wi_ref[0], preferred_element_type=f32) + bi_ref[0, 0]
    x = _gelu_tanh(x)
    x = _layer_norm(x, ln1_g_ref[0, 0], ln1_b_ref[0, 0]).astype(bf16)
    x = jnp.dot(x, Wo_ref[0], preferred_element_type=f32) + bo_ref[0, 0]

    layer_out = x + attn_out                # (S, H) f32

    # carry the running value to the next layer (VMEM only, no HBM round-trip)
    val_ref[...] = layer_out

    # accumulate the per-layer feature sum; write the average once at the end
    @pl.when(l == 0)
    def _():
        acc_ref[...] = layer_out

    @pl.when(l != 0)
    def _():
        acc_ref[...] = acc_ref[...] + layer_out

    @pl.when(l == n_layers - 1)
    def _():
        out_ref[0] = acc_ref[...] * (1.0 / n_layers)


def _vmem_limit_bytes(S, H, I):
    f32, bf16 = 4, 2
    seq = S * H * f32
    # per-layer weights change along the layer grid axis -> double-buffered
    w_layer = ((6 * H * H + H * I + I * H) * bf16
               + (7 * H * 2 + 6 * H + 2 * I + I + H) * f32)
    bufs = 2 * w_layer
    # layer-invariant (revisited) blocks: q,k,q1,k1,v + mask + output
    bufs += 2 * (6 * seq + S * f32)
    # value-carry + feature-sum scratch
    scratch = 2 * seq
    # live in-kernel temporaries: f32 + bf16 projections, score matrices,
    # context, MLP intermediate
    tmp = (5 * seq + 5 * S * H * bf16 + 4 * S * S * f32
           + seq + 2 * S * I * f32)
    est = bufs + scratch + tmp + (4 << 20)    # headroom for compiler scratch
    return int(min(max(est, 32 << 20), 64 << 20))


def dual_qk_former(params_list, q, k, q1, k1, v, attention_mask, n_heads):
    """Matches Dual_QK_former.forward (dropout = identity)."""
    B, S, H = q.shape
    L = len(params_list)
    I = params_list[0]["Wi"].shape[-1]
    head_dim = H // n_heads

    # head-independent per-key additive mask -> (B, 1, S); broadcast in-kernel.
    mask2 = attention_mask.reshape(B, 1, S).astype(jnp.float32)

    # stack per-layer params along a leading layer axis; matmul weights in bf16
    stack = lambda name: jnp.stack([p[name] for p in params_list], axis=0)
    ln_g, ln_b = stack("ln_g"), stack("ln_b")
    ln1_g, ln1_b = stack("ln1_g"), stack("ln1_b")
    W = stack("W").astype(jnp.bfloat16)
    bW = stack("bW")
    Wi = stack("Wi").astype(jnp.bfloat16)
    bi = stack("bi")
    Wo = stack("Wo").astype(jnp.bfloat16)
    bo = stack("bo")

    kernel = functools.partial(dual_qk_former_kernel, n_heads, head_dim, L)

    seq_spec = pl.BlockSpec((1, S, H), lambda b, l: (b, 0, 0))
    mask_spec = pl.BlockSpec((1, 1, S), lambda b, l: (b, 0, 0))

    def lyr(arr):
        # one layer's slice, indexed by the layer grid axis
        shp = (1,) + arr.shape[1:]
        return pl.BlockSpec(
            shp, lambda b, l, _r=arr.ndim - 1: (l,) + (0,) * _r)

    out = pl.pallas_call(
        kernel,
        out_shape=jax.ShapeDtypeStruct((B, S, H), jnp.float32),
        grid_spec=pltpu.PrefetchScalarGridSpec(
            num_scalar_prefetch=0,
            grid=(B, L),
            in_specs=[seq_spec, seq_spec, seq_spec, seq_spec, seq_spec,
                      mask_spec,
                      lyr(ln_g), lyr(ln_b), lyr(ln1_g), lyr(ln1_b),
                      lyr(W), lyr(bW), lyr(Wi), lyr(bi), lyr(Wo), lyr(bo)],
            out_specs=pl.BlockSpec((1, S, H), lambda b, l: (b, 0, 0)),
            scratch_shapes=[pltpu.VMEM((S, H), jnp.float32),   # value carry
                            pltpu.VMEM((S, H), jnp.float32)]), # feature sum
        compiler_params=pltpu.CompilerParams(
            dimension_semantics=("parallel", "arbitrary"),
            vmem_limit_bytes=_vmem_limit_bytes(S, H, I)),
    )(q, k, q1, k1, v, mask2,
      ln_g, ln_b, ln1_g, ln1_b, W, bW, Wi, bi, Wo, bo)
    return out


# ---------------------------------------------------------------------------
# pure-JAX f32 reference (follows the PyTorch code line-by-line) for validation
# ---------------------------------------------------------------------------
def _ref_layer(p, q, k, q1, k1, v, mask4, n_heads):
    B, S, H = q.shape
    hd = H // n_heads

    def heads(x):  # [B,S,H] -> [B,nh,S,hd]
        return x.reshape(B, S, n_heads, hd).transpose(0, 2, 1, 3)

    qn = _layer_norm(q, p["ln_g"][0], p["ln_b"][0])
    kn = _layer_norm(k, p["ln_g"][1], p["ln_b"][1])
    q1n = _layer_norm(q1, p["ln_g"][2], p["ln_b"][2])
    k1n = _layer_norm(k1, p["ln_g"][3], p["ln_b"][3])
    vn = _layer_norm(v, p["ln_g"][4], p["ln_b"][4])

    Q = qn @ p["W"][0] + p["bW"][0]
    K = kn @ p["W"][1] + p["bW"][1]
    Q1 = q1n @ p["W"][2] + p["bW"][2]
    K1 = k1n @ p["W"][3] + p["bW"][3]
    V = vn @ p["W"][4] + p["bW"][4]

    Qh, Kh, Vh = heads(Q), heads(K), heads(V)
    Q1h, K1h = heads(Q1), heads(K1)
    s0 = Qh @ Kh.transpose(0, 1, 3, 2) / math.sqrt(hd) + mask4
    s1 = Q1h @ K1h.transpose(0, 1, 3, 2) / math.sqrt(hd) + mask4
    ctx = jax.nn.softmax(s0, axis=-1) @ Vh + jax.nn.softmax(s1, axis=-1) @ Vh
    ctx = ctx.transpose(0, 2, 1, 3).reshape(B, S, H)
    ctx = _layer_norm(ctx, p["ln_g"][5], p["ln_b"][5])
    attn_out = ctx @ p["W"][5] + p["bW"][5] + v

    x = _layer_norm(attn_out, p["ln_g"][6], p["ln_b"][6])
    x = x @ p["Wi"] + p["bi"][0]
    x = jax.nn.gelu(x, approximate=False)
    x = _layer_norm(x, p["ln1_g"][0], p["ln1_b"][0])
    x = x @ p["Wo"] + p["bo"][0]
    return x + attn_out


def _ref_former(params_list, q, k, q1, k1, v, attention_mask, n_heads):
    mask4 = attention_mask  # (B,1,1,S) broadcasts against (B,nh,S,S)
    value = v
    feats = []
    for p in params_list:
        value = _ref_layer(p, q, k, q1, k1, value, mask4, n_heads)
        feats.append(value)
    return sum(feats) / float(len(feats))


# ---------------------------------------------------------------------------
# deterministic parameter init (synthetic; matches module shapes)
# ---------------------------------------------------------------------------
def init_layer_params(key, H, I):
    ks = jax.random.split(key, 6)
    return dict(
        # rows: pre_ln_q, pre_ln_k, pre_ln_q1, pre_ln_k1, pre_ln_v, post_ln, mlp.ln
        ln_g=jnp.ones((7, H), jnp.float32),
        ln_b=jnp.zeros((7, H), jnp.float32),
        ln1_g=jnp.ones((1, I), jnp.float32),
        ln1_b=jnp.zeros((1, I), jnp.float32),
        # rows: query, key, query1, key1, value, dense   (stored as (in, out))
        W=0.05 * jax.random.normal(ks[0], (6, H, H), jnp.float32),
        bW=0.05 * jax.random.normal(ks[1], (6, H), jnp.float32),
        Wi=0.05 * jax.random.normal(ks[2], (H, I), jnp.float32),
        bi=0.05 * jax.random.normal(ks[3], (1, I), jnp.float32),
        Wo=0.05 * jax.random.normal(ks[4], (I, H), jnp.float32),
        bo=0.05 * jax.random.normal(ks[5], (1, H), jnp.float32),
    )


if __name__ == "__main__":
    B, S, H, I = 2, 8, 32, 64
    n_heads, n_layers = 4, 2

    key = jax.random.PRNGKey(0)
    kq, kk, kq1, kk1, kv, km, kp = jax.random.split(key, 7)

    q = jax.random.normal(kq, (B, S, H), jnp.float32)
    k = jax.random.normal(kk, (B, S, H), jnp.float32)
    q1 = jax.random.normal(kq1, (B, S, H), jnp.float32)
    k1 = jax.random.normal(kk1, (B, S, H), jnp.float32)
    v = jax.random.normal(kv, (B, S, H), jnp.float32)

    keep = jax.random.bernoulli(km, 0.9, (B, 1, 1, S))
    attention_mask = jnp.where(keep, 0.0, -10000.0).astype(jnp.float32)

    params_list = [init_layer_params(kk_, H, I)
                   for kk_ in jax.random.split(kp, n_layers)]

    former = jax.jit(dual_qk_former, static_argnames="n_heads")
    out = former(params_list, q, k, q1, k1, v, attention_mask, n_heads=n_heads)
    out = jax.block_until_ready(out)

    ref = _ref_former(params_list, q, k, q1, k1, v, attention_mask, n_heads)
    np.testing.assert_allclose(np.asarray(out), np.asarray(ref),
                               rtol=2e-2, atol=2e-2)

    print("KERNEL_OK")
</pallas_src>

<mosaic_0001>
module attributes {stable_mosaic.version = 11 : i64} {
  func.func @dual_qk_former_kernel(%arg0: i32, %arg1: i32, %arg2: memref<1x8x32xf32, #tpu.memory_space<vmem>>, %arg3: memref<1x8x32xf32, #tpu.memory_space<vmem>>, %arg4: memref<1x8x32xf32, #tpu.memory_space<vmem>>, %arg5: memref<1x8x32xf32, #tpu.memory_space<vmem>>, %arg6: memref<1x8x32xf32, #tpu.memory_space<vmem>>, %arg7: memref<1x1x8xf32, #tpu.memory_space<vmem>>, %arg8: memref<1x7x32xf32, #tpu.memory_space<vmem>>, %arg9: memref<1x7x32xf32, #tpu.memory_space<vmem>>, %arg10: memref<1x1x64xf32, #tpu.memory_space<vmem>>, %arg11: memref<1x1x64xf32, #tpu.memory_space<vmem>>, %arg12: memref<1x6x32x32xbf16, #tpu.memory_space<vmem>>, %arg13: memref<1x6x32xf32, #tpu.memory_space<vmem>>, %arg14: memref<1x32x64xbf16, #tpu.memory_space<vmem>>, %arg15: memref<1x1x64xf32, #tpu.memory_space<vmem>>, %arg16: memref<1x64x32xbf16, #tpu.memory_space<vmem>>, %arg17: memref<1x1x32xf32, #tpu.memory_space<vmem>>, %arg18: memref<1x8x32xf32, #tpu.memory_space<vmem>>, %arg19: memref<8x32xf32, #tpu.memory_space<vmem>>, %arg20: memref<8x32xf32, #tpu.memory_space<vmem>>) attributes {dimension_semantics = [#tpu.dimension_semantics<parallel>, #tpu.dimension_semantics<arbitrary>], iteration_bounds = array<i64: 2, 2>, scalar_prefetch = 0 : i64, scratch_operands = 2 : i64, tpu.core_type = #tpu.core_type<tc>, window_params = [{transform_indices = @transform_0, window_bounds = array<i64: 1, 8, 32>}, {transform_indices = @transform_1, window_bounds = array<i64: 1, 8, 32>}, {transform_indices = @transform_2, window_bounds = array<i64: 1, 8, 32>}, {transform_indices = @transform_3, window_bounds = array<i64: 1, 8, 32>}, {transform_indices = @transform_4, window_bounds = array<i64: 1, 8, 32>}, {transform_indices = @transform_5, window_bounds = array<i64: 1, 1, 8>}, {transform_indices = @transform_6, window_bounds = array<i64: 1, 7, 32>}, {transform_indices = @transform_7, window_bounds = array<i64: 1, 7, 32>}, {transform_indices = @transform_8, window_bounds = array<i64: 1, 1, 64>}, {transform_indices = @transform_9, window_bounds = array<i64: 1, 1, 64>}, {transform_indices = @transform_10, window_bounds = array<i64: 1, 6, 32, 32>}, {transform_indices = @transform_11, window_bounds = array<i64: 1, 6, 32>}, {transform_indices = @transform_12, window_bounds = array<i64: 1, 32, 64>}, {transform_indices = @transform_13, window_bounds = array<i64: 1, 1, 64>}, {transform_indices = @transform_14, window_bounds = array<i64: 1, 64, 32>}, {transform_indices = @transform_15, window_bounds = array<i64: 1, 1, 32>}, {transform_indices = @transform_16, window_bounds = array<i64: 1, 8, 32>}]} {
    %c0_i32 = arith.constant 0 : i32
    %0 = arith.cmpi eq, %arg1, %c0_i32 : i32
    %1 = arith.extui %0 : i1 to i32
    %c0_i32_0 = arith.constant 0 : i32
    %2 = arith.cmpi ne, %1, %c0_i32_0 : i32
    scf.if %2 {
      %c0_201 = arith.constant 0 : index
      %c0_202 = arith.constant 0 : index
      %c0_203 = arith.constant 0 : index
      %465 = vector.load %arg6[%c0_201, %c0_202, %c0_203] : memref<1x8x32xf32, #tpu.memory_space<vmem>>, vector<1x8x32xf32>
      %466 = vector.shape_cast %465 : vector<1x8x32xf32> to vector<8x32xf32>
      %c0_204 = arith.constant 0 : index
      %c0_205 = arith.constant 0 : index
      %467 = vector.load %arg19[%c0_204, %c0_205] : memref<8x32xf32, #tpu.memory_space<vmem>>, vector<8x32xf32>
      tpu.vector_store %arg19[%c0_204, %c0_205], %466 {strides = array<i32>} : memref<8x32xf32, #tpu.memory_space<vmem>>, vector<8x32xf32>,
    } else {
    }
    %c0 = arith.constant 0 : index
    %c0_1 = arith.constant 0 : index
    %3 = vector.load %arg19[%c0, %c0_1] : memref<8x32xf32, #tpu.memory_space<vmem>>, vector<8x32xf32>
    %c0_2 = arith.constant 0 : index
    %c0_3 = arith.constant 0 : index
    %c0_4 = arith.constant 0 : index
    %4 = vector.load %arg7[%c0_2, %c0_3, %c0_4] : memref<1x1x8xf32, #tpu.memory_space<vmem>>, vector<1x1x8xf32>
    %5 = vector.shape_cast %4 : vector<1x1x8xf32> to vector<1x8xf32>
    %c0_5 = arith.constant 0 : index
    %c0_6 = arith.constant 0 : index
    %c0_7 = arith.constant 0 : index
    %6 = vector.load %arg2[%c0_5, %c0_6, %c0_7] : memref<1x8x32xf32, #tpu.memory_space<vmem>>, vector<1x8x32xf32>
    %7 = vector.shape_cast %6 : vector<1x8x32xf32> to vector<8x32xf32>
    %c0_8 = arith.constant 0 : index
    %c0_9 = arith.constant 0 : index
    %c0_10 = arith.constant 0 : index
    %8 = vector.load %arg8[%c0_8, %c0_9, %c0_10] : memref<1x7x32xf32, #tpu.memory_space<vmem>>, vector<1x1x32xf32>
    %9 = vector.shape_cast %8 : vector<1x1x32xf32> to vector<32xf32>
    %c0_11 = arith.constant 0 : index
    %c0_12 = arith.constant 0 : index
    %c0_13 = arith.constant 0 : index
    %10 = vector.load %arg9[%c0_11, %c0_12, %c0_13] : memref<1x7x32xf32, #tpu.memory_space<vmem>>, vector<1x1x32xf32>
    %11 = vector.shape_cast %10 : vector<1x1x32xf32> to vector<32xf32>
    %cst = arith.constant dense<0.000000e+00> : vector<8xf32>
    %12 = vector.multi_reduction <add>, %7, %cst [1] : vector<8x32xf32> to vector<8xf32>
    %13 = vector.shape_cast %12 : vector<8xf32> to vector<8x1xf32>
    %cst_14 = arith.constant 3.200000e+01 : f32
    %14 = vector.broadcast %cst_14 : f32 to vector<8x1xf32>
    %15 = arith.divf %13, %14 : vector<8x1xf32>
    %16 = vector.broadcast %15 : vector<8x1xf32> to vector<8x32xf32>
    %17 = arith.subf %7, %16 : vector<8x32xf32>
    %18 = arith.mulf %17, %17 : vector<8x32xf32>
    %cst_15 = arith.constant dense<0.000000e+00> : vector<8xf32>
    %19 = vector.multi_reduction <add>, %18, %cst_15 [1] : vector<8x32xf32> to vector<8xf32>
    %20 = vector.shape_cast %19 : vector<8xf32> to vector<8x1xf32>
    %cst_16 = arith.constant 3.200000e+01 : f32
    %21 = vector.broadcast %cst_16 : f32 to vector<8x1xf32>
    %22 = arith.divf %20, %21 : vector<8x1xf32>
    %cst_17 = arith.constant 9.99999996E-13 : f32
    %23 = vector.broadcast %cst_17 : f32 to vector<8x1xf32>
    %24 = arith.addf %22, %23 : vector<8x1xf32>
    %25 = math.rsqrt %24 : vector<8x1xf32>
    %26 = vector.broadcast %25 : vector<8x1xf32> to vector<8x32xf32>
    %27 = arith.mulf %17, %26 : vector<8x32xf32>
    %28 = vector.shape_cast %9 : vector<32xf32> to vector<1x32xf32>
    %29 = vector.broadcast %28 : vector<1x32xf32> to vector<8x32xf32>
    %30 = arith.mulf %27, %29 : vector<8x32xf32>
    %31 = vector.shape_cast %11 : vector<32xf32> to vector<1x32xf32>
    %32 = vector.broadcast %31 : vector<1x32xf32> to vector<8x32xf32>
    %33 = arith.addf %30, %32 : vector<8x32xf32>
    %34 = arith.truncf %33 : vector<8x32xf32> to vector<8x32xbf16>
    %c0_18 = arith.constant 0 : index
    %c0_19 = arith.constant 0 : index
    %c0_20 = arith.constant 0 : index
    %35 = vector.load %arg3[%c0_18, %c0_19, %c0_20] : memref<1x8x32xf32, #tpu.memory_space<vmem>>, vector<1x8x32xf32>
    %36 = vector.shape_cast %35 : vector<1x8x32xf32> to vector<8x32xf32>
    %c0_21 = arith.constant 0 : index
    %c1 = arith.constant 1 : index
    %c0_22 = arith.constant 0 : index
    %37 = vector.load %arg8[%c0_21, %c1, %c0_22] : memref<1x7x32xf32, #tpu.memory_space<vmem>>, vector<1x1x32xf32>
    %38 = vector.shape_cast %37 : vector<1x1x32xf32> to vector<32xf32>
    %c0_23 = arith.constant 0 : index
    %c1_24 = arith.constant 1 : index
    %c0_25 = arith.constant 0 : index
    %39 = vector.load %arg9[%c0_23, %c1_24, %c0_25] : memref<1x7x32xf32, #tpu.memory_space<vmem>>, vector<1x1x32xf32>
    %40 = vector.shape_cast %39 : vector<1x1x32xf32> to vector<32xf32>
    %cst_26 = arith.constant dense<0.000000e+00> : vector<8xf32>
    %41 = vector.multi_reduction <add>, %36, %cst_26 [1] : vector<8x32xf32> to vector<8xf32>
    %42 = vector.shape_cast %41 : vector<8xf32> to vector<8x1xf32>
    %cst_27 = arith.constant 3.200000e+01 : f32
    %43 = vector.broadcast %cst_27 : f32 to vector<8x1xf32>
    %44 = arith.divf %42, %43 : vector<8x1xf32>
    %45 = vector.broadcast %44 : vector<8x1xf32> to vector<8x32xf32>
    %46 = arith.subf %36, %45 : vector<8x32xf32>
    %47 = arith.mulf %46, %46 : vector<8x32xf32>
    %cst_28 = arith.constant dense<0.000000e+00> : vector<8xf32>
    %48 = vector.multi_reduction <add>, %47, %cst_28 [1] : vector<8x32xf32> to vector<8xf32>
    %49 = vector.shape_cast %48 : vector<8xf32> to vector<8x1xf32>
    %cst_29 = arith.constant 3.200000e+01 : f32
    %50 = vector.broadcast %cst_29 : f32 to vector<8x1xf32>
    %51 = arith.divf %49, %50 : vector<8x1xf32>
    %cst_30 = arith.constant 9.99999996E-13 : f32
    %52 = vector.broadcast %cst_30 : f32 to vector<8x1xf32>
    %53 = arith.addf %51, %52 : vector<8x1xf32>
    %54 = math.rsqrt %53 : vector<8x1xf32>
    %55 = vector.broadcast %54 : vector<8x1xf32> to vector<8x32xf32>
    %56 = arith.mulf %46, %55 : vector<8x32xf32>
    %57 = vector.shape_cast %38 : vector<32xf32> to vector<1x32xf32>
    %58 = vector.broadcast %57 : vector<1x32xf32> to vector<8x32xf32>
    %59 = arith.mulf %56, %58 : vector<8x32xf32>
    %60 = vector.shape_cast %40 : vector<32xf32> to vector<1x32xf32>
    %61 = vector.broadcast %60 : vector<1x32xf32> to vector<8x32xf32>
    %62 = arith.addf %59, %61 : vector<8x32xf32>
    %63 = arith.truncf %62 : vector<8x32xf32> to vector<8x32xbf16>
    %c0_31 = arith.constant 0 : index
    %c0_32 = arith.constant 0 : index
    %c0_33 = arith.constant 0 : index
    %64 = vector.load %arg4[%c0_31, %c0_32, %c0_33] : memref<1x8x32xf32, #tpu.memory_space<vmem>>, vector<1x8x32xf32>
    %65 = vector.shape_cast %64 : vector<1x8x32xf32> to vector<8x32xf32>
    %c0_34 = arith.constant 0 : index
    %c2 = arith.constant 2 : index
    %c0_35 = arith.constant 0 : index
    %66 = vector.load %arg8[%c0_34, %c2, %c0_35] : memref<1x7x32xf32, #tpu.memory_space<vmem>>, vector<1x1x32xf32>
    %67 = vector.shape_cast %66 : vector<1x1x32xf32> to vector<32xf32>
    %c0_36 = arith.constant 0 : index
    %c2_37 = arith.constant 2 : index
    %c0_38 = arith.constant 0 : index
    %68 = vector.load %arg9[%c0_36, %c2_37, %c0_38] : memref<1x7x32xf32, #tpu.memory_space<vmem>>, vector<1x1x32xf32>
    %69 = vector.shape_cast %68 : vector<1x1x32xf32> to vector<32xf32>
    %cst_39 = arith.constant dense<0.000000e+00> : vector<8xf32>
    %70 = vector.multi_reduction <add>, %65, %cst_39 [1] : vector<8x32xf32> to vector<8xf32>
    %71 = vector.shape_cast %70 : vector<8xf32> to vector<8x1xf32>
    %cst_40 = arith.constant 3.200000e+01 : f32
    %72 = vector.broadcast %cst_40 : f32 to vector<8x1xf32>
    %73 = arith.divf %71, %72 : vector<8x1xf32>
    %74 = vector.broadcast %73 : vector<8x1xf32> to vector<8x32xf32>
    %75 = arith.subf %65, %74 : vector<8x32xf32>
    %76 = arith.mulf %75, %75 : vector<8x32xf32>
    %cst_41 = arith.constant dense<0.000000e+00> : vector<8xf32>
    %77 = vector.multi_reduction <add>, %76, %cst_41 [1] : vector<8x32xf32> to vector<8xf32>
    %78 = vector.shape_cast %77 : vector<8xf32> to vector<8x1xf32>
    %cst_42 = arith.constant 3.200000e+01 : f32
    %79 = vector.broadcast %cst_42 : f32 to vector<8x1xf32>
    %80 = arith.divf %78, %79 : vector<8x1xf32>
    %cst_43 = arith.constant 9.99999996E-13 : f32
    %81 = vector.broadcast %cst_43 : f32 to vector<8x1xf32>
    %82 = arith.addf %80, %81 : vector<8x1xf32>
    %83 = math.rsqrt %82 : vector<8x1xf32>
    %84 = vector.broadcast %83 : vector<8x1xf32> to vector<8x32xf32>
    %85 = arith.mulf %75, %84 : vector<8x32xf32>
    %86 = vector.shape_cast %67 : vector<32xf32> to vector<1x32xf32>
    %87 = vector.broadcast %86 : vector<1x32xf32> to vector<8x32xf32>
    %88 = arith.mulf %85, %87 : vector<8x32xf32>
    %89 = vector.shape_cast %69 : vector<32xf32> to vector<1x32xf32>
    %90 = vector.broadcast %89 : vector<1x32xf32> to vector<8x32xf32>
    %91 = arith.addf %88, %90 : vector<8x32xf32>
    %92 = arith.truncf %91 : vector<8x32xf32> to vector<8x32xbf16>
    %c0_44 = arith.constant 0 : index
    %c0_45 = arith.constant 0 : index
    %c0_46 = arith.constant 0 : index
    %93 = vector.load %arg5[%c0_44, %c0_45, %c0_46] : memref<1x8x32xf32, #tpu.memory_space<vmem>>, vector<1x8x32xf32>
    %94 = vector.shape_cast %93 : vector<1x8x32xf32> to vector<8x32xf32>
    %c0_47 = arith.constant 0 : index
    %c3 = arith.constant 3 : index
    %c0_48 = arith.constant 0 : index
    %95 = vector.load %arg8[%c0_47, %c3, %c0_48] : memref<1x7x32xf32, #tpu.memory_space<vmem>>, vector<1x1x32xf32>
    %96 = vector.shape_cast %95 : vector<1x1x32xf32> to vector<32xf32>
    %c0_49 = arith.constant 0 : index
    %c3_50 = arith.constant 3 : index
    %c0_51 = arith.constant 0 : index
    %97 = vector.load %arg9[%c0_49, %c3_50, %c0_51] : memref<1x7x32xf32, #tpu.memory_space<vmem>>, vector<1x1x32xf32>
    %98 = vector.shape_cast %97 : vector<1x1x32xf32> to vector<32xf32>
    %cst_52 = arith.constant dense<0.000000e+00> : vector<8xf32>
    %99 = vector.multi_reduction <add>, %94, %cst_52 [1] : vector<8x32xf32> to vector<8xf32>
    %100 = vector.shape_cast %99 : vector<8xf32> to vector<8x1xf32>
    %cst_53 = arith.constant 3.200000e+01 : f32
    %101 = vector.broadcast %cst_53 : f32 to vector<8x1xf32>
    %102 = arith.divf %100, %101 : vector<8x1xf32>
    %103 = vector.broadcast %102 : vector<8x1xf32> to vector<8x32xf32>
    %104 = arith.subf %94, %103 : vector<8x32xf32>
    %105 = arith.mulf %104, %104 : vector<8x32xf32>
    %cst_54 = arith.constant dense<0.000000e+00> : vector<8xf32>
    %106 = vector.multi_reduction <add>, %105, %cst_54 [1] : vector<8x32xf32> to vector<8xf32>
    %107 = vector.shape_cast %106 : vector<8xf32> to vector<8x1xf32>
    %cst_55 = arith.constant 3.200000e+01 : f32
    %108 = vector.broadcast %cst_55 : f32 to vector<8x1xf32>
    %109 = arith.divf %107, %108 : vector<8x1xf32>
    %cst_56 = arith.constant 9.99999996E-13 : f32
    %110 = vector.broadcast %cst_56 : f32 to vector<8x1xf32>
    %111 = arith.addf %109, %110 : vector<8x1xf32>
    %112 = math.rsqrt %111 : vector<8x1xf32>
    %113 = vector.broadcast %112 : vector<8x1xf32> to vector<8x32xf32>
    %114 = arith.mulf %104, %113 : vector<8x32xf32>
    %115 = vector.shape_cast %96 : vector<32xf32> to vector<1x32xf32>
    %116 = vector.broadcast %115 : vector<1x32xf32> to vector<8x32xf32>
    %117 = arith.mulf %114, %116 : vector<8x32xf32>
    %118 = vector.shape_cast %98 : vector<32xf32> to vector<1x32xf32>
    %119 = vector.broadcast %118 : vector<1x32xf32> to vector<8x32xf32>
    %120 = arith.addf %117, %119 : vector<8x32xf32>
    %121 = arith.truncf %120 : vector<8x32xf32> to vector<8x32xbf16>
    %c0_57 = arith.constant 0 : index
    %c4 = arith.constant 4 : index
    %c0_58 = arith.constant 0 : index
    %122 = vector.load %arg8[%c0_57, %c4, %c0_58] : memref<1x7x32xf32, #tpu.memory_space<vmem>>, vector<1x1x32xf32>
    %123 = vector.shape_cast %122 : vector<1x1x32xf32> to vector<32xf32>
    %c0_59 = arith.constant 0 : index
    %c4_60 = arith.constant 4 : index
    %c0_61 = arith.constant 0 : index
    %124 = vector.load %arg9[%c0_59, %c4_60, %c0_61] : memref<1x7x32xf32, #tpu.memory_space<vmem>>, vector<1x1x32xf32>
    %125 = vector.shape_cast %124 : vector<1x1x32xf32> to vector<32xf32>
    %cst_62 = arith.constant dense<0.000000e+00> : vector<8xf32>
    %126 = vector.multi_reduction <add>, %3, %cst_62 [1] : vector<8x32xf32> to vector<8xf32>
    %127 = vector.shape_cast %126 : vector<8xf32> to vector<8x1xf32>
    %cst_63 = arith.constant 3.200000e+01 : f32
    %128 = vector.broadcast %cst_63 : f32 to vector<8x1xf32>
    %129 = arith.divf %127, %128 : vector<8x1xf32>
    %130 = vector.broadcast %129 : vector<8x1xf32> to vector<8x32xf32>
    %131 = arith.subf %3, %130 : vector<8x32xf32>
    %132 = arith.mulf %131, %131 : vector<8x32xf32>
    %cst_64 = arith.constant dense<0.000000e+00> : vector<8xf32>
    %133 = vector.multi_reduction <add>, %132, %cst_64 [1] : vector<8x32xf32> to vector<8xf32>
    %134 = vector.shape_cast %133 : vector<8xf32> to vector<8x1xf32>
    %cst_65 = arith.constant 3.200000e+01 : f32
    %135 = vector.broadcast %cst_65 : f32 to vector<8x1xf32>
    %136 = arith.divf %134, %135 : vector<8x1xf32>
    %cst_66 = arith.constant 9.99999996E-13 : f32
    %137 = vector.broadcast %cst_66 : f32 to vector<8x1xf32>
    %138 = arith.addf %136, %137 : vector<8x1xf32>
    %139 = math.rsqrt %138 : vector<8x1xf32>
    %140 = vector.broadcast %139 : vector<8x1xf32> to vector<8x32xf32>
    %141 = arith.mulf %131, %140 : vector<8x32xf32>
    %142 = vector.shape_cast %123 : vector<32xf32> to vector<1x32xf32>
    %143 = vector.broadcast %142 : vector<1x32xf32> to vector<8x32xf32>
    %144 = arith.mulf %141, %143 : vector<8x32xf32>
    %145 = vector.shape_cast %125 : vector<32xf32> to vector<1x32xf32>
    %146 = vector.broadcast %145 : vector<1x32xf32> to vector<8x32xf32>
    %147 = arith.addf %144, %146 : vector<8x32xf32>
    %148 = arith.truncf %147 : vector<8x32xf32> to vector<8x32xbf16>
    %c0_67 = arith.constant 0 : index
    %c0_68 = arith.constant 0 : index
    %c0_69 = arith.constant 0 : index
    %c0_70 = arith.constant 0 : index
    %149 = vector.load %arg12[%c0_67, %c0_68, %c0_69, %c0_70] : memref<1x6x32x32xbf16, #tpu.memory_space<vmem>>, vector<1x1x32x32xbf16>
    %150 = vector.shape_cast %149 : vector<1x1x32x32xbf16> to vector<32x32xbf16>
    %cst_71 = arith.constant dense<0.000000e+00> : vector<8x32xf32>
    %151 = tpu.matmul %34, %150, %cst_71 {dimension_numbers = #tpu.dot_dimension_numbers<[1], [0], [0], [1], [0, 0, 1, 1], [], []>} : vector<8x32xbf16>, vector<32x32xbf16>, vector<8x32xf32> -> vector<8x32xf32>
    %c0_72 = arith.constant 0 : index
    %c0_73 = arith.constant 0 : index
    %c0_74 = arith.constant 0 : index
    %152 = vector.load %arg13[%c0_72, %c0_73, %c0_74] : memref<1x6x32xf32, #tpu.memory_space<vmem>>, vector<1x1x32xf32>
    %153 = vector.shape_cast %152 : vector<1x1x32xf32> to vector<32xf32>
    %154 = vector.shape_cast %153 : vector<32xf32> to vector<1x32xf32>
    %155 = vector.broadcast %154 : vector<1x32xf32> to vector<8x32xf32>
    %156 = arith.addf %151, %155 : vector<8x32xf32>
    %c0_75 = arith.constant 0 : index
    %c1_76 = arith.constant 1 : index
    %c0_77 = arith.constant 0 : index
    %c0_78 = arith.constant 0 : index
    %157 = vector.load %arg12[%c0_75, %c1_76, %c0_77, %c0_78] : memref<1x6x32x32xbf16, #tpu.memory_space<vmem>>, vector<1x1x32x32xbf16>
    %158 = vector.shape_cast %157 : vector<1x1x32x32xbf16> to vector<32x32xbf16>
    %cst_79 = arith.constant dense<0.000000e+00> : vector<8x32xf32>
    %159 = tpu.matmul %63, %158, %cst_79 {dimension_numbers = #tpu.dot_dimension_numbers<[1], [0], [0], [1], [0, 0, 1, 1], [], []>} : vector<8x32xbf16>, vector<32x32xbf16>, vector<8x32xf32> -> vector<8x32xf32>
    %c0_80 = arith.constant 0 : index
    %c1_81 = arith.constant 1 : index
    %c0_82 = arith.constant 0 : index
    %160 = vector.load %arg13[%c0_80, %c1_81, %c0_82] : memref<1x6x32xf32, #tpu.memory_space<vmem>>, vector<1x1x32xf32>
    %161 = vector.shape_cast %160 : vector<1x1x32xf32> to vector<32xf32>
    %162 = vector.shape_cast %161 : vector<32xf32> to vector<1x32xf32>
    %163 = vector.broadcast %162 : vector<1x32xf32> to vector<8x32xf32>
    %164 = arith.addf %159, %163 : vector<8x32xf32>
    %c0_83 = arith.constant 0 : index
    %c2_84 = arith.constant 2 : index
    %c0_85 = arith.constant 0 : index
    %c0_86 = arith.constant 0 : index
    %165 = vector.load %arg12[%c0_83, %c2_84, %c0_85, %c0_86] : memref<1x6x32x32xbf16, #tpu.memory_space<vmem>>, vector<1x1x32x32xbf16>
    %166 = vector.shape_cast %165 : vector<1x1x32x32xbf16> to vector<32x32xbf16>
    %cst_87 = arith.constant dense<0.000000e+00> : vector<8x32xf32>
    %167 = tpu.matmul %92, %166, %cst_87 {dimension_numbers = #tpu.dot_dimension_numbers<[1], [0], [0], [1], [0, 0, 1, 1], [], []>} : vector<8x32xbf16>, vector<32x32xbf16>, vector<8x32xf32> -> vector<8x32xf32>
    %c0_88 = arith.constant 0 : index
    %c2_89 = arith.constant 2 : index
    %c0_90 = arith.constant 0 : index
    %168 = vector.load %arg13[%c0_88, %c2_89, %c0_90] : memref<1x6x32xf32, #tpu.memory_space<vmem>>, vector<1x1x32xf32>
    %169 = vector.shape_cast %168 : vector<1x1x32xf32> to vector<32xf32>
    %170 = vector.shape_cast %169 : vector<32xf32> to vector<1x32xf32>
    %171 = vector.broadcast %170 : vector<1x32xf32> to vector<8x32xf32>
    %172 = arith.addf %167, %171 : vector<8x32xf32>
    %c0_91 = arith.constant 0 : index
    %c3_92 = arith.constant 3 : index
    %c0_93 = arith.constant 0 : index
    %c0_94 = arith.constant 0 : index
    %173 = vector.load %arg12[%c0_91, %c3_92, %c0_93, %c0_94] : memref<1x6x32x32xbf16, #tpu.memory_space<vmem>>, vector<1x1x32x32xbf16>
    %174 = vector.shape_cast %173 : vector<1x1x32x32xbf16> to vector<32x32xbf16>
    %cst_95 = arith.constant dense<0.000000e+00> : vector<8x32xf32>
    %175 = tpu.matmul %121, %174, %cst_95 {dimension_numbers = #tpu.dot_dimension_numbers<[1], [0], [0], [1], [0, 0, 1, 1], [], []>} : vector<8x32xbf16>, vector<32x32xbf16>, vector<8x32xf32> -> vector<8x32xf32>
    %c0_96 = arith.constant 0 : index
    %c3_97 = arith.constant 3 : index
    %c0_98 = arith.constant 0 : index
    %176 = vector.load %arg13[%c0_96, %c3_97, %c0_98] : memref<1x6x32xf32, #tpu.memory_space<vmem>>, vector<1x1x32xf32>
    %177 = vector.shape_cast %176 : vector<1x1x32xf32> to vector<32xf32>
    %178 = vector.shape_cast %177 : vector<32xf32> to vector<1x32xf32>
    %179 = vector.broadcast %178 : vector<1x32xf32> to vector<8x32xf32>
    %180 = arith.addf %175, %179 : vector<8x32xf32>
    %c0_99 = arith.constant 0 : index
    %c4_100 = arith.constant 4 : index
    %c0_101 = arith.constant 0 : index
    %c0_102 = arith.constant 0 : index
    %181 = vector.load %arg12[%c0_99, %c4_100, %c0_101, %c0_102] : memref<1x6x32x32xbf16, #tpu.memory_space<vmem>>, vector<1x1x32x32xbf16>
    %182 = vector.shape_cast %181 : vector<1x1x32x32xbf16> to vector<32x32xbf16>
    %cst_103 = arith.constant dense<0.000000e+00> : vector<8x32xf32>
    %183 = tpu.matmul %148, %182, %cst_103 {dimension_numbers = #tpu.dot_dimension_numbers<[1], [0], [0], [1], [0, 0, 1, 1], [], []>} : vector<8x32xbf16>, vector<32x32xbf16>, vector<8x32xf32> -> vector<8x32xf32>
    %c0_104 = arith.constant 0 : index
    %c4_105 = arith.constant 4 : index
    %c0_106 = arith.constant 0 : index
    %184 = vector.load %arg13[%c0_104, %c4_105, %c0_106] : memref<1x6x32xf32, #tpu.memory_space<vmem>>, vector<1x1x32xf32>
    %185 = vector.shape_cast %184 : vector<1x1x32xf32> to vector<32xf32>
    %186 = vector.shape_cast %185 : vector<32xf32> to vector<1x32xf32>
    %187 = vector.broadcast %186 : vector<1x32xf32> to vector<8x32xf32>
    %188 = arith.addf %183, %187 : vector<8x32xf32>
    %cst_107 = arith.constant 0.353553385 : f32
    %189 = vector.broadcast %cst_107 : f32 to vector<8x32xf32>
    %190 = arith.mulf %156, %189 : vector<8x32xf32>
    %191 = arith.truncf %190 : vector<8x32xf32> to vector<8x32xbf16>
    %cst_108 = arith.constant 0.353553385 : f32
    %192 = vector.broadcast %cst_108 : f32 to vector<8x32xf32>
    %193 = arith.mulf %172, %192 : vector<8x32xf32>
    %194 = arith.truncf %193 : vector<8x32xf32> to vector<8x32xbf16>
    %195 = arith.truncf %164 : vector<8x32xf32> to vector<8x32xbf16>
    %196 = arith.truncf %180 : vector<8x32xf32> to vector<8x32xbf16>
    %197 = arith.truncf %188 : vector<8x32xf32> to vector<8x32xbf16>
    %198 = vector.extract_strided_slice %191 {offsets = [0, 0], sizes = [8, 8], strides = [1, 1]} : vector<8x32xbf16> to vector<8x8xbf16>
    %199 = vector.extract_strided_slice %195 {offsets = [0, 0], sizes = [8, 8], strides = [1, 1]} : vector<8x32xbf16> to vector<8x8xbf16>
    %cst_109 = arith.constant dense<0.000000e+00> : vector<8x8xf32>
    %200 = tpu.matmul %198, %199, %cst_109 {dimension_numbers = #tpu.dot_dimension_numbers<[1], [1], [0], [0], [0, 0, 1, 0], [], []>} : vector<8x8xbf16>, vector<8x8xbf16>, vector<8x8xf32> -> vector<8x8xf32>
    %201 = vector.broadcast %5 : vector<1x8xf32> to vector<8x8xf32>
    %202 = arith.addf %200, %201 : vector<8x8xf32>
    %203 = vector.extract_strided_slice %194 {offsets = [0, 0], sizes = [8, 8], strides = [1, 1]} : vector<8x32xbf16> to vector<8x8xbf16>
    %204 = vector.extract_strided_slice %196 {offsets = [0, 0], sizes = [8, 8], strides = [1, 1]} : vector<8x32xbf16> to vector<8x8xbf16>
    %cst_110 = arith.constant dense<0.000000e+00> : vector<8x8xf32>
    %205 = tpu.matmul %203, %204, %cst_110 {dimension_numbers = #tpu.dot_dimension_numbers<[1], [1], [0], [0], [0, 0, 1, 0], [], []>} : vector<8x8xbf16>, vector<8x8xbf16>, vector<8x8xf32> -> vector<8x8xf32>
    %206 = vector.broadcast %5 : vector<1x8xf32> to vector<8x8xf32>
    %207 = arith.addf %205, %206 : vector<8x8xf32>
    %cst_111 = arith.constant dense<0xFF800000> : vector<8xf32>
    %208 = vector.multi_reduction <maximumf>, %202, %cst_111 [1] : vector<8x8xf32> to vector<8xf32>
    %209 = vector.shape_cast %208 : vector<8xf32> to vector<8x1xf32>
    %210 = vector.broadcast %209 : vector<8x1xf32> to vector<8x8xf32>
    %211 = arith.subf %202, %210 : vector<8x8xf32>
    %212 = math.exp %211 : vector<8x8xf32>
    %cst_112 = arith.constant dense<0.000000e+00> : vector<8xf32>
    %213 = vector.multi_reduction <add>, %212, %cst_112 [1] : vector<8x8xf32> to vector<8xf32>
    %214 = vector.shape_cast %213 : vector<8xf32> to vector<8x1xf32>
    %215 = tpu.reciprocal %214 {approx = true} : vector<8x1xf32> -> vector<8x1xf32>
    %216 = vector.broadcast %215 : vector<8x1xf32> to vector<8x8xf32>
    %217 = arith.mulf %212, %216 : vector<8x8xf32>
    %cst_113 = arith.constant dense<0xFF800000> : vector<8xf32>
    %218 = vector.multi_reduction <maximumf>, %207, %cst_113 [1] : vector<8x8xf32> to vector<8xf32>
    %219 = vector.shape_cast %218 : vector<8xf32> to vector<8x1xf32>
    %220 = vector.broadcast %219 : vector<8x1xf32> to vector<8x8xf32>
    %221 = arith.subf %207, %220 : vector<8x8xf32>
    %222 = math.exp %221 : vector<8x8xf32>
    %cst_114 = arith.constant dense<0.000000e+00> : vector<8xf32>
    %223 = vector.multi_reduction <add>, %222, %cst_114 [1] : vector<8x8xf32> to vector<8xf32>
    %224 = vector.shape_cast %223 : vector<8xf32> to vector<8x1xf32>
    %225 = tpu.reciprocal %224 {approx = true} : vector<8x1xf32> -> vector<8x1xf32>
    %226 = vector.broadcast %225 : vector<8x1xf32> to vector<8x8xf32>
    %227 = arith.mulf %222, %226 : vector<8x8xf32>
    %228 = arith.addf %217, %227 : vector<8x8xf32>
    %229 = arith.truncf %228 : vector<8x8xf32> to vector<8x8xbf16>
    %230 = vector.extract_strided_slice %197 {offsets = [0, 0], sizes = [8, 8], strides = [1, 1]} : vector<8x32xbf16> to vector<8x8xbf16>
    %cst_115 = arith.constant dense<0.000000e+00> : vector<8x8xf32>
    %231 = tpu.matmul %229, %230, %cst_115 {dimension_numbers = #tpu.dot_dimension_numbers<[1], [0], [0], [1], [0, 0, 1, 1], [], []>} : vector<8x8xbf16>, vector<8x8xbf16>, vector<8x8xf32> -> vector<8x8xf32>
    %232 = vector.extract_strided_slice %191 {offsets = [0, 8], sizes = [8, 8], strides = [1, 1]} : vector<8x32xbf16> to vector<8x8xbf16>
    %233 = vector.extract_strided_slice %195 {offsets = [0, 8], sizes = [8, 8], strides = [1, 1]} : vector<8x32xbf16> to vector<8x8xbf16>
    %cst_116 = arith.constant dense<0.000000e+00> : vector<8x8xf32>
    %234 = tpu.matmul %232, %233, %cst_116 {dimension_numbers = #tpu.dot_dimension_numbers<[1], [1], [0], [0], [0, 0, 1, 0], [], []>} : vector<8x8xbf16>, vector<8x8xbf16>, vector<8x8xf32> -> vector<8x8xf32>
    %235 = vector.broadcast %5 : vector<1x8xf32> to vector<8x8xf32>
    %236 = arith.addf %234, %235 : vector<8x8xf32>
    %237 = vector.extract_strided_slice %194 {offsets = [0, 8], sizes = [8, 8], strides = [1, 1]} : vector<8x32xbf16> to vector<8x8xbf16>
    %238 = vector.extract_strided_slice %196 {offsets = [0, 8], sizes = [8, 8], strides = [1, 1]} : vector<8x32xbf16> to vector<8x8xbf16>
    %cst_117 = arith.constant dense<0.000000e+00> : vector<8x8xf32>
    %239 = tpu.matmul %237, %238, %cst_117 {dimension_numbers = #tpu.dot_dimension_numbers<[1], [1], [0], [0], [0, 0, 1, 0], [], []>} : vector<8x8xbf16>, vector<8x8xbf16>, vector<8x8xf32> -> vector<8x8xf32>
    %240 = vector.broadcast %5 : vector<1x8xf32> to vector<8x8xf32>
    %241 = arith.addf %239, %240 : vector<8x8xf32>
    %cst_118 = arith.constant dense<0xFF800000> : vector<8xf32>
    %242 = vector.multi_reduction <maximumf>, %236, %cst_118 [1] : vector<8x8xf32> to vector<8xf32>
    %243 = vector.shape_cast %242 : vector<8xf32> to vector<8x1xf32>
    %244 = vector.broadcast %243 : vector<8x1xf32> to vector<8x8xf32>
    %245 = arith.subf %236, %244 : vector<8x8xf32>
    %246 = math.exp %245 : vector<8x8xf32>
    %cst_119 = arith.constant dense<0.000000e+00> : vector<8xf32>
    %247 = vector.multi_reduction <add>, %246, %cst_119 [1] : vector<8x8xf32> to vector<8xf32>
    %248 = vector.shape_cast %247 : vector<8xf32> to vector<8x1xf32>
    %249 = tpu.reciprocal %248 {approx = true} : vector<8x1xf32> -> vector<8x1xf32>
    %250 = vector.broadcast %249 : vector<8x1xf32> to vector<8x8xf32>
    %251 = arith.mulf %246, %250 : vector<8x8xf32>
    %cst_120 = arith.constant dense<0xFF800000> : vector<8xf32>
    %252 = vector.multi_reduction <maximumf>, %241, %cst_120 [1] : vector<8x8xf32> to vector<8xf32>
    %253 = vector.shape_cast %252 : vector<8xf32> to vector<8x1xf32>
    %254 = vector.broadcast %253 : vector<8x1xf32> to vector<8x8xf32>
    %255 = arith.subf %241, %254 : vector<8x8xf32>
    %256 = math.exp %255 : vector<8x8xf32>
    %cst_121 = arith.constant dense<0.000000e+00> : vector<8xf32>
    %257 = vector.multi_reduction <add>, %256, %cst_121 [1] : vector<8x8xf32> to vector<8xf32>
    %258 = vector.shape_cast %257 : vector<8xf32> to vector<8x1xf32>
    %259 = tpu.reciprocal %258 {approx = true} : vector<8x1xf32> -> vector<8x1xf32>
    %260 = vector.broadcast %259 : vector<8x1xf32> to vector<8x8xf32>
    %261 = arith.mulf %256, %260 : vector<8x8xf32>
    %262 = arith.addf %251, %261 : vector<8x8xf32>
    %263 = arith.truncf %262 : vector<8x8xf32> to vector<8x8xbf16>
    %264 = vector.extract_strided_slice %197 {offsets = [0, 8], sizes = [8, 8], strides = [1, 1]} : vector<8x32xbf16> to vector<8x8xbf16>
    %cst_122 = arith.constant dense<0.000000e+00> : vector<8x8xf32>
    %265 = tpu.matmul %263, %264, %cst_122 {dimension_numbers = #tpu.dot_dimension_numbers<[1], [0], [0], [1], [0, 0, 1, 1], [], []>} : vector<8x8xbf16>, vector<8x8xbf16>, vector<8x8xf32> -> vector<8x8xf32>
    %266 = vector.extract_strided_slice %191 {offsets = [0, 16], sizes = [8, 8], strides = [1, 1]} : vector<8x32xbf16> to vector<8x8xbf16>
    %267 = vector.extract_strided_slice %195 {offsets = [0, 16], sizes = [8, 8], strides = [1, 1]} : vector<8x32xbf16> to vector<8x8xbf16>
    %cst_123 = arith.constant dense<0.000000e+00> : vector<8x8xf32>
    %268 = tpu.matmul %266, %267, %cst_123 {dimension_numbers = #tpu.dot_dimension_numbers<[1], [1], [0], [0], [0, 0, 1, 0], [], []>} : vector<8x8xbf16>, vector<8x8xbf16>, vector<8x8xf32> -> vector<8x8xf32>
    %269 = vector.broadcast %5 : vector<1x8xf32> to vector<8x8xf32>
    %270 = arith.addf %268, %269 : vector<8x8xf32>
    %271 = vector.extract_strided_slice %194 {offsets = [0, 16], sizes = [8, 8], strides = [1, 1]} : vector<8x32xbf16> to vector<8x8xbf16>
    %272 = vector.extract_strided_slice %196 {offsets = [0, 16], sizes = [8, 8], strides = [1, 1]} : vector<8x32xbf16> to vector<8x8xbf16>
    %cst_124 = arith.constant dense<0.000000e+00> : vector<8x8xf32>
    %273 = tpu.matmul %271, %272, %cst_124 {dimension_numbers = #tpu.dot_dimension_numbers<[1], [1], [0], [0], [0, 0, 1, 0], [], []>} : vector<8x8xbf16>, vector<8x8xbf16>, vector<8x8xf32> -> vector<8x8xf32>
    %274 = vector.broadcast %5 : vector<1x8xf32> to vector<8x8xf32>
    %275 = arith.addf %273, %274 : vector<8x8xf32>
    %cst_125 = arith.constant dense<0xFF800000> : vector<8xf32>
    %276 = vector.multi_reduction <maximumf>, %270, %cst_125 [1] : vector<8x8xf32> to vector<8xf32>
    %277 = vector.shape_cast %276 : vector<8xf32> to vector<8x1xf32>
    %278 = vector.broadcast %277 : vector<8x1xf32> to vector<8x8xf32>
    %279 = arith.subf %270, %278 : vector<8x8xf32>
    %280 = math.exp %279 : vector<8x8xf32>
    %cst_126 = arith.constant dense<0.000000e+00> : vector<8xf32>
    %281 = vector.multi_reduction <add>, %280, %cst_126 [1] : vector<8x8xf32> to vector<8xf32>
    %282 = vector.shape_cast %281 : vector<8xf32> to vector<8x1xf32>
    %283 = tpu.reciprocal %282 {approx = true} : vector<8x1xf32> -> vector<8x1xf32>
    %284 = vector.broadcast %283 : vector<8x1xf32> to vector<8x8xf32>
    %285 = arith.mulf %280, %284 : vector<8x8xf32>
    %cst_127 = arith.constant dense<0xFF800000> : vector<8xf32>
    %286 = vector.multi_reduction <maximumf>, %275, %cst_127 [1] : vector<8x8xf32> to vector<8xf32>
    %287 = vector.shape_cast %286 : vector<8xf32> to vector<8x1xf32>
    %288 = vector.broadcast %287 : vector<8x1xf32> to vector<8x8xf32>
    %289 = arith.subf %275, %288 : vector<8x8xf32>
    %290 = math.exp %289 : vector<8x8xf32>
    %cst_128 = arith.constant dense<0.000000e+00> : vector<8xf32>
    %291 = vector.multi_reduction <add>, %290, %cst_128 [1] : vector<8x8xf32> to vector<8xf32>
    %292 = vector.shape_cast %291 : vector<8xf32> to vector<8x1xf32>
    %293 = tpu.reciprocal %292 {approx = true} : vector<8x1xf32> -> vector<8x1xf32>
    %294 = vector.broadcast %293 : vector<8x1xf32> to vector<8x8xf32>
    %295 = arith.mulf %290, %294 : vector<8x8xf32>
    %296 = arith.addf %285, %295 : vector<8x8xf32>
    %297 = arith.truncf %296 : vector<8x8xf32> to vector<8x8xbf16>
    %298 = vector.extract_strided_slice %197 {offsets = [0, 16], sizes = [8, 8], strides = [1, 1]} : vector<8x32xbf16> to vector<8x8xbf16>
    %cst_129 = arith.constant dense<0.000000e+00> : vector<8x8xf32>
    %299 = tpu.matmul %297, %298, %cst_129 {dimension_numbers = #tpu.dot_dimension_numbers<[1], [0], [0], [1], [0, 0, 1, 1], [], []>} : vector<8x8xbf16>, vector<8x8xbf16>, vector<8x8xf32> -> vector<8x8xf32>
    %300 = vector.extract_strided_slice %191 {offsets = [0, 24], sizes = [8, 8], strides = [1, 1]} : vector<8x32xbf16> to vector<8x8xbf16>
    %301 = vector.extract_strided_slice %195 {offsets = [0, 24], sizes = [8, 8], strides = [1, 1]} : vector<8x32xbf16> to vector<8x8xbf16>
    %cst_130 = arith.constant dense<0.000000e+00> : vector<8x8xf32>
    %302 = tpu.matmul %300, %301, %cst_130 {dimension_numbers = #tpu.dot_dimension_numbers<[1], [1], [0], [0], [0, 0, 1, 0], [], []>} : vector<8x8xbf16>, vector<8x8xbf16>, vector<8x8xf32> -> vector<8x8xf32>
    %303 = vector.broadcast %5 : vector<1x8xf32> to vector<8x8xf32>
    %304 = arith.addf %302, %303 : vector<8x8xf32>
    %305 = vector.extract_strided_slice %194 {offsets = [0, 24], sizes = [8, 8], strides = [1, 1]} : vector<8x32xbf16> to vector<8x8xbf16>
    %306 = vector.extract_strided_slice %196 {offsets = [0, 24], sizes = [8, 8], strides = [1, 1]} : vector<8x32xbf16> to vector<8x8xbf16>
    %cst_131 = arith.constant dense<0.000000e+00> : vector<8x8xf32>
    %307 = tpu.matmul %305, %306, %cst_131 {dimension_numbers = #tpu.dot_dimension_numbers<[1], [1], [0], [0], [0, 0, 1, 0], [], []>} : vector<8x8xbf16>, vector<8x8xbf16>, vector<8x8xf32> -> vector<8x8xf32>
    %308 = vector.broadcast %5 : vector<1x8xf32> to vector<8x8xf32>
    %309 = arith.addf %307, %308 : vector<8x8xf32>
    %cst_132 = arith.constant dense<0xFF800000> : vector<8xf32>
    %310 = vector.multi_reduction <maximumf>, %304, %cst_132 [1] : vector<8x8xf32> to vector<8xf32>
    %311 = vector.shape_cast %310 : vector<8xf32> to vector<8x1xf32>
    %312 = vector.broadcast %311 : vector<8x1xf32> to vector<8x8xf32>
    %313 = arith.subf %304, %312 : vector<8x8xf32>
    %314 = math.exp %313 : vector<8x8xf32>
    %cst_133 = arith.constant dense<0.000000e+00> : vector<8xf32>
    %315 = vector.multi_reduction <add>, %314, %cst_133 [1] : vector<8x8xf32> to vector<8xf32>
    %316 = vector.shape_cast %315 : vector<8xf32> to vector<8x1xf32>
    %317 = tpu.reciprocal %316 {approx = true} : vector<8x1xf32> -> vector<8x1xf32>
    %318 = vector.broadcast %317 : vector<8x1xf32> to vector<8x8xf32>
    %319 = arith.mulf %314, %318 : vector<8x8xf32>
    %cst_134 = arith.constant dense<0xFF800000> : vector<8xf32>
    %320 = vector.multi_reduction <maximumf>, %309, %cst_134 [1] : vector<8x8xf32> to vector<8xf32>
    %321 = vector.shape_cast %320 : vector<8xf32> to vector<8x1xf32>
    %322 = vector.broadcast %321 : vector<8x1xf32> to vector<8x8xf32>
    %323 = arith.subf %309, %322 : vector<8x8xf32>
    %324 = math.exp %323 : vector<8x8xf32>
    %cst_135 = arith.constant dense<0.000000e+00> : vector<8xf32>
    %325 = vector.multi_reduction <add>, %324, %cst_135 [1] : vector<8x8xf32> to vector<8xf32>
    %326 = vector.shape_cast %325 : vector<8xf32> to vector<8x1xf32>
    %327 = tpu.reciprocal %326 {approx = true} : vector<8x1xf32> -> vector<8x1xf32>
    %328 = vector.broadcast %327 : vector<8x1xf32> to vector<8x8xf32>
    %329 = arith.mulf %324, %328 : vector<8x8xf32>
    %330 = arith.addf %319, %329 : vector<8x8xf32>
    %331 = arith.truncf %330 : vector<8x8xf32> to vector<8x8xbf16>
    %332 = vector.extract_strided_slice %197 {offsets = [0, 24], sizes = [8, 8], strides = [1, 1]} : vector<8x32xbf16> to vector<8x8xbf16>
    %cst_136 = arith.constant dense<0.000000e+00> : vector<8x8xf32>
    %333 = tpu.matmul %331, %332, %cst_136 {dimension_numbers = #tpu.dot_dimension_numbers<[1], [0], [0], [1], [0, 0, 1, 1], [], []>} : vector<8x8xbf16>, vector<8x8xbf16>, vector<8x8xf32> -> vector<8x8xf32>
    %334 = tpu.concatenate %231, %265, %299, %333 in 1 : vector<8x8xf32>, vector<8x8xf32>, vector<8x8xf32>, vector<8x8xf32> -> vector<8x32xf32>
    %c0_137 = arith.constant 0 : index
    %c5 = arith.constant 5 : index
    %c0_138 = arith.constant 0 : index
    %335 = vector.load %arg8[%c0_137, %c5, %c0_138] : memref<1x7x32xf32, #tpu.memory_space<vmem>>, vector<1x1x32xf32>
    %336 = vector.shape_cast %335 : vector<1x1x32xf32> to vector<32xf32>
    %c0_139 = arith.constant 0 : index
    %c5_140 = arith.constant 5 : index
    %c0_141 = arith.constant 0 : index
    %337 = vector.load %arg9[%c0_139, %c5_140, %c0_141] : memref<1x7x32xf32, #tpu.memory_space<vmem>>, vector<1x1x32xf32>
    %338 = vector.shape_cast %337 : vector<1x1x32xf32> to vector<32xf32>
    %cst_142 = arith.constant dense<0.000000e+00> : vector<8xf32>
    %339 = vector.multi_reduction <add>, %334, %cst_142 [1] : vector<8x32xf32> to vector<8xf32>
    %340 = vector.shape_cast %339 : vector<8xf32> to vector<8x1xf32>
    %cst_143 = arith.constant 3.200000e+01 : f32
    %341 = vector.broadcast %cst_143 : f32 to vector<8x1xf32>
    %342 = arith.divf %340, %341 : vector<8x1xf32>
    %343 = vector.broadcast %342 : vector<8x1xf32> to vector<8x32xf32>
    %344 = arith.subf %334, %343 : vector<8x32xf32>
    %345 = arith.mulf %344, %344 : vector<8x32xf32>
    %cst_144 = arith.constant dense<0.000000e+00> : vector<8xf32>
    %346 = vector.multi_reduction <add>, %345, %cst_144 [1] : vector<8x32xf32> to vector<8xf32>
    %347 = vector.shape_cast %346 : vector<8xf32> to vector<8x1xf32>
    %cst_145 = arith.constant 3.200000e+01 : f32
    %348 = vector.broadcast %cst_145 : f32 to vector<8x1xf32>
    %349 = arith.divf %347, %348 : vector<8x1xf32>
    %cst_146 = arith.constant 9.99999996E-13 : f32
    %350 = vector.broadcast %cst_146 : f32 to vector<8x1xf32>
    %351 = arith.addf %349, %350 : vector<8x1xf32>
    %352 = math.rsqrt %351 : vector<8x1xf32>
    %353 = vector.broadcast %352 : vector<8x1xf32> to vector<8x32xf32>
    %354 = arith.mulf %344, %353 : vector<8x32xf32>
    %355 = vector.shape_cast %336 : vector<32xf32> to vector<1x32xf32>
    %356 = vector.broadcast %355 : vector<1x32xf32> to vector<8x32xf32>
    %357 = arith.mulf %354, %356 : vector<8x32xf32>
    %358 = vector.shape_cast %338 : vector<32xf32> to vector<1x32xf32>
    %359 = vector.broadcast %358 : vector<1x32xf32> to vector<8x32xf32>
    %360 = arith.addf %357, %359 : vector<8x32xf32>
    %361 = arith.truncf %360 : vector<8x32xf32> to vector<8x32xbf16>
    %c0_147 = arith.constant 0 : index
    %c5_148 = arith.constant 5 : index
    %c0_149 = arith.constant 0 : index
    %c0_150 = arith.constant 0 : index
    %362 = vector.load %arg12[%c0_147, %c5_148, %c0_149, %c0_150] : memref<1x6x32x32xbf16, #tpu.memory_space<vmem>>, vector<1x1x32x32xbf16>
    %363 = vector.shape_cast %362 : vector<1x1x32x32xbf16> to vector<32x32xbf16>
    %cst_151 = arith.constant dense<0.000000e+00> : vector<8x32xf32>
    %364 = tpu.matmul %361, %363, %cst_151 {dimension_numbers = #tpu.dot_dimension_numbers<[1], [0], [0], [1], [0, 0, 1, 1], [], []>} : vector<8x32xbf16>, vector<32x32xbf16>, vector<8x32xf32> -> vector<8x32xf32>
    %c0_152 = arith.constant 0 : index
    %c5_153 = arith.constant 5 : index
    %c0_154 = arith.constant 0 : index
    %365 = vector.load %arg13[%c0_152, %c5_153, %c0_154] : memref<1x6x32xf32, #tpu.memory_space<vmem>>, vector<1x1x32xf32>
    %366 = vector.shape_cast %365 : vector<1x1x32xf32> to vector<32xf32>
    %367 = vector.shape_cast %366 : vector<32xf32> to vector<1x32xf32>
    %368 = vector.broadcast %367 : vector<1x32xf32> to vector<8x32xf32>
    %369 = arith.addf %364, %368 : vector<8x32xf32>
    %370 = arith.addf %369, %3 : vector<8x32xf32>
    %c0_155 = arith.constant 0 : index
    %c6 = arith.constant 6 : index
    %c0_156 = arith.constant 0 : index
    %371 = vector.load %arg8[%c0_155, %c6, %c0_156] : memref<1x7x32xf32, #tpu.memory_space<vmem>>, vector<1x1x32xf32>
    %372 = vector.shape_cast %371 : vector<1x1x32xf32> to vector<32xf32>
    %c0_157 = arith.constant 0 : index
    %c6_158 = arith.constant 6 : index
    %c0_159 = arith.constant 0 : index
    %373 = vector.load %arg9[%c0_157, %c6_158, %c0_159] : memref<1x7x32xf32, #tpu.memory_space<vmem>>, vector<1x1x32xf32>
    %374 = vector.shape_cast %373 : vector<1x1x32xf32> to vector<32xf32>
    %cst_160 = arith.constant dense<0.000000e+00> : vector<8xf32>
    %375 = vector.multi_reduction <add>, %370, %cst_160 [1] : vector<8x32xf32> to vector<8xf32>
    %376 = vector.shape_cast %375 : vector<8xf32> to vector<8x1xf32>
    %cst_161 = arith.constant 3.200000e+01 : f32
    %377 = vector.broadcast %cst_161 : f32 to vector<8x1xf32>
    %378 = arith.divf %376, %377 : vector<8x1xf32>
    %379 = vector.broadcast %378 : vector<8x1xf32> to vector<8x32xf32>
    %380 = arith.subf %370, %379 : vector<8x32xf32>
    %381 = arith.mulf %380, %380 : vector<8x32xf32>
    %cst_162 = arith.constant dense<0.000000e+00> : vector<8xf32>
    %382 = vector.multi_reduction <add>, %381, %cst_162 [1] : vector<8x32xf32> to vector<8xf32>
    %383 = vector.shape_cast %382 : vector<8xf32> to vector<8x1xf32>
    %cst_163 = arith.constant 3.200000e+01 : f32
    %384 = vector.broadcast %cst_163 : f32 to vector<8x1xf32>
    %385 = arith.divf %383, %384 : vector<8x1xf32>
    %cst_164 = arith.constant 9.99999996E-13 : f32
    %386 = vector.broadcast %cst_164 : f32 to vector<8x1xf32>
    %387 = arith.addf %385, %386 : vector<8x1xf32>
    %388 = math.rsqrt %387 : vector<8x1xf32>
    %389 = vector.broadcast %388 : vector<8x1xf32> to vector<8x32xf32>
    %390 = arith.mulf %380, %389 : vector<8x32xf32>
    %391 = vector.shape_cast %372 : vector<32xf32> to vector<1x32xf32>
    %392 = vector.broadcast %391 : vector<1x32xf32> to vector<8x32xf32>
    %393 = arith.mulf %390, %392 : vector<8x32xf32>
    %394 = vector.shape_cast %374 : vector<32xf32> to vector<1x32xf32>
    %395 = vector.broadcast %394 : vector<1x32xf32> to vector<8x32xf32>
    %396 = arith.addf %393, %395 : vector<8x32xf32>
    %397 = arith.truncf %396 : vector<8x32xf32> to vector<8x32xbf16>
    %c0_165 = arith.constant 0 : index
    %c0_166 = arith.constant 0 : index
    %c0_167 = arith.constant 0 : index
    %398 = vector.load %arg14[%c0_165, %c0_166, %c0_167] : memref<1x32x64xbf16, #tpu.memory_space<vmem>>, vector<1x32x64xbf16>
    %399 = vector.shape_cast %398 : vector<1x32x64xbf16> to vector<32x64xbf16>
    %cst_168 = arith.constant dense<0.000000e+00> : vector<8x64xf32>
    %400 = tpu.matmul %397, %399, %cst_168 {dimension_numbers = #tpu.dot_dimension_numbers<[1], [0], [0], [1], [0, 0, 1, 1], [], []>} : vector<8x32xbf16>, vector<32x64xbf16>, vector<8x64xf32> -> vector<8x64xf32>
    %c0_169 = arith.constant 0 : index
    %c0_170 = arith.constant 0 : index
    %c0_171 = arith.constant 0 : index
    %401 = vector.load %arg15[%c0_169, %c0_170, %c0_171] : memref<1x1x64xf32, #tpu.memory_space<vmem>>, vector<1x1x64xf32>
    %402 = vector.shape_cast %401 : vector<1x1x64xf32> to vector<64xf32>
    %403 = vector.shape_cast %402 : vector<64xf32> to vector<1x64xf32>
    %404 = vector.broadcast %403 : vector<1x64xf32> to vector<8x64xf32>
    %405 = arith.addf %400, %404 : vector<8x64xf32>
    %cst_172 = arith.constant 5.000000e-01 : f32
    %406 = vector.broadcast %cst_172 : f32 to vector<8x64xf32>
    %407 = arith.mulf %406, %405 : vector<8x64xf32>
    %cst_173 = arith.constant 4.471500e-02 : f32
    %408 = vector.broadcast %cst_173 : f32 to vector<8x64xf32>
    %409 = arith.mulf %408, %405 : vector<8x64xf32>
    %410 = arith.mulf %409, %405 : vector<8x64xf32>
    %411 = arith.mulf %410, %405 : vector<8x64xf32>
    %412 = arith.addf %405, %411 : vector<8x64xf32>
    %cst_174 = arith.constant 0.797884583 : f32
    %413 = vector.broadcast %cst_174 : f32 to vector<8x64xf32>
    %414 = arith.mulf %413, %412 : vector<8x64xf32>
    %415 = math.tanh %414 : vector<8x64xf32>
    %cst_175 = arith.constant 1.000000e+00 : f32
    %416 = vector.broadcast %cst_175 : f32 to vector<8x64xf32>
    %417 = arith.addf %416, %415 : vector<8x64xf32>
    %418 = arith.mulf %407, %417 : vector<8x64xf32>
    %c0_176 = arith.constant 0 : index
    %c0_177 = arith.constant 0 : index
    %c0_178 = arith.constant 0 : index
    %419 = vector.load %arg10[%c0_176, %c0_177, %c0_178] : memref<1x1x64xf32, #tpu.memory_space<vmem>>, vector<1x1x64xf32>
    %420 = vector.shape_cast %419 : vector<1x1x64xf32> to vector<64xf32>
    %c0_179 = arith.constant 0 : index
    %c0_180 = arith.constant 0 : index
    %c0_181 = arith.constant 0 : index
    %421 = vector.load %arg11[%c0_179, %c0_180, %c0_181] : memref<1x1x64xf32, #tpu.memory_space<vmem>>, vector<1x1x64xf32>
    %422 = vector.shape_cast %421 : vector<1x1x64xf32> to vector<64xf32>
    %cst_182 = arith.constant dense<0.000000e+00> : vector<8xf32>
    %423 = vector.multi_reduction <add>, %418, %cst_182 [1] : vector<8x64xf32> to vector<8xf32>
    %424 = vector.shape_cast %423 : vector<8xf32> to vector<8x1xf32>
    %cst_183 = arith.constant 6.400000e+01 : f32
    %425 = vector.broadcast %cst_183 : f32 to vector<8x1xf32>
    %426 = arith.divf %424, %425 : vector<8x1xf32>
    %427 = vector.broadcast %426 : vector<8x1xf32> to vector<8x64xf32>
    %428 = arith.subf %418, %427 : vector<8x64xf32>
    %429 = arith.mulf %428, %428 : vector<8x64xf32>
    %cst_184 = arith.constant dense<0.000000e+00> : vector<8xf32>
    %430 = vector.multi_reduction <add>, %429, %cst_184 [1] : vector<8x64xf32> to vector<8xf32>
    %431 = vector.shape_cast %430 : vector<8xf32> to vector<8x1xf32>
    %cst_185 = arith.constant 6.400000e+01 : f32
    %432 = vector.broadcast %cst_185 : f32 to vector<8x1xf32>
    %433 = arith.divf %431, %432 : vector<8x1xf32>
    %cst_186 = arith.constant 9.99999996E-13 : f32
    %434 = vector.broadcast %cst_186 : f32 to vector<8x1xf32>
    %435 = arith.addf %433, %434 : vector<8x1xf32>
    %436 = math.rsqrt %435 : vector<8x1xf32>
    %437 = vector.broadcast %436 : vector<8x1xf32> to vector<8x64xf32>
    %438 = arith.mulf %428, %437 : vector<8x64xf32>
    %439 = vector.shape_cast %420 : vector<64xf32> to vector<1x64xf32>
    %440 = vector.broadcast %439 : vector<1x64xf32> to vector<8x64xf32>
    %441 = arith.mulf %438, %440 : vector<8x64xf32>
    %442 = vector.shape_cast %422 : vector<64xf32> to vector<1x64xf32>
    %443 = vector.broadcast %442 : vector<1x64xf32> to vector<8x64xf32>
    %444 = arith.addf %441, %443 : vector<8x64xf32>
    %445 = arith.truncf %444 : vector<8x64xf32> to vector<8x64xbf16>
    %c0_187 = arith.constant 0 : index
    %c0_188 = arith.constant 0 : index
    %c0_189 = arith.constant 0 : index
    %446 = vector.load %arg16[%c0_187, %c0_188, %c0_189] : memref<1x64x32xbf16, #tpu.memory_space<vmem>>, vector<1x64x32xbf16>
    %447 = vector.shape_cast %446 : vector<1x64x32xbf16> to vector<64x32xbf16>
    %cst_190 = arith.constant dense<0.000000e+00> : vector<8x32xf32>
    %448 = tpu.matmul %445, %447, %cst_190 {dimension_numbers = #tpu.dot_dimension_numbers<[1], [0], [0], [1], [0, 0, 1, 1], [], []>} : vector<8x64xbf16>, vector<64x32xbf16>, vector<8x32xf32> -> vector<8x32xf32>
    %c0_191 = arith.constant 0 : index
    %c0_192 = arith.constant 0 : index
    %c0_193 = arith.constant 0 : index
    %449 = vector.load %arg17[%c0_191, %c0_192, %c0_193] : memref<1x1x32xf32, #tpu.memory_space<vmem>>, vector<1x1x32xf32>
    %450 = vector.shape_cast %449 : vector<1x1x32xf32> to vector<32xf32>
    %451 = vector.shape_cast %450 : vector<32xf32> to vector<1x32xf32>
    %452 = vector.broadcast %451 : vector<1x32xf32> to vector<8x32xf32>
    %453 = arith.addf %448, %452 : vector<8x32xf32>
    %454 = arith.addf %453, %370 : vector<8x32xf32>
    %c0_194 = arith.constant 0 : index
    %c0_195 = arith.constant 0 : index
    %455 = vector.load %arg19[%c0_194, %c0_195] : memref<8x32xf32, #tpu.memory_space<vmem>>, vector<8x32xf32>
    tpu.vector_store %arg19[%c0_194, %c0_195], %454 {strides = array<i32>} : memref<8x32xf32, #tpu.memory_space<vmem>>, vector<8x32xf32>,
    %c0_i32_196 = arith.constant 0 : i32
    %456 = arith.cmpi eq, %arg1, %c0_i32_196 : i32
    %457 = arith.extui %456 : i1 to i32
    %c0_i32_197 = arith.constant 0 : i32
    %458 = arith.cmpi ne, %457, %c0_i32_197 : i32
    scf.if %458 {
      %c0_201 = arith.constant 0 : index
      %c0_202 = arith.constant 0 : index
      %465 = vector.load %arg20[%c0_201, %c0_202] : memref<8x32xf32, #tpu.memory_space<vmem>>, vector<8x32xf32>
      tpu.vector_store %arg20[%c0_201, %c0_202], %454 {strides = array<i32>} : memref<8x32xf32, #tpu.memory_space<vmem>>, vector<8x32xf32>,
    } else {
    }
    %c0_i32_198 = arith.constant 0 : i32
    %459 = arith.cmpi ne, %arg1, %c0_i32_198 : i32
    %460 = arith.extui %459 : i1 to i32
    %c0_i32_199 = arith.constant 0 : i32
    %461 = arith.cmpi ne, %460, %c0_i32_199 : i32
    scf.if %461 {
      %c0_201 = arith.constant 0 : index
      %c0_202 = arith.constant 0 : index
      %465 = vector.load %arg20[%c0_201, %c0_202] : memref<8x32xf32, #tpu.memory_space<vmem>>, vector<8x32xf32>
      %466 = arith.addf %465, %454 : vector<8x32xf32>
      %c0_203 = arith.constant 0 : index
      %c0_204 = arith.constant 0 : index
      %467 = vector.load %arg20[%c0_203, %c0_204] : memref<8x32xf32, #tpu.memory_space<vmem>>, vector<8x32xf32>
      tpu.vector_store %arg20[%c0_203, %c0_204], %466 {strides = array<i32>} : memref<8x32xf32, #tpu.memory_space<vmem>>, vector<8x32xf32>,
    } else {
    }
    %c1_i32 = arith.constant 1 : i32
    %462 = arith.cmpi eq, %arg1, %c1_i32 : i32
    %463 = arith.extui %462 : i1 to i32
    %c0_i32_200 = arith.constant 0 : i32
    %464 = arith.cmpi ne, %463, %c0_i32_200 : i32
    scf.if %464 {
      %c0_201 = arith.constant 0 : index
      %c0_202 = arith.constant 0 : index
      %465 = vector.load %arg20[%c0_201, %c0_202] : memref<8x32xf32, #tpu.memory_space<vmem>>, vector<8x32xf32>
      %cst_203 = arith.constant 5.000000e-01 : f32
      %466 = vector.broadcast %cst_203 : f32 to vector<8x32xf32>
      %467 = arith.mulf %465, %466 : vector<8x32xf32>
      %c0_204 = arith.constant 0 : index
      %c0_205 = arith.constant 0 : index
      %c0_206 = arith.constant 0 : index
      %468 = vector.load %arg18[%c0_204, %c0_205, %c0_206] : memref<1x8x32xf32, #tpu.memory_space<vmem>>, vector<1x8x32xf32>
      %469 = vector.shape_cast %468 : vector<1x8x32xf32> to vector<8x32xf32>
      %470 = vector.shape_cast %467 : vector<8x32xf32> to vector<1x8x32xf32>
      tpu.vector_store %arg18[%c0_204, %c0_205, %c0_206], %470 {strides = array<i32>} : memref<1x8x32xf32, #tpu.memory_space<vmem>>, vector<1x8x32xf32>,
    } else {
    }
    return
  }
  func.func @transform_0(%arg0: i32, %arg1: i32) -> (i32, i32, i32) {
    %c0_i32 = arith.constant 0 : i32
    %c0_i32_0 = arith.constant 0 : i32
    %c0_i32_1 = arith.constant 0 : i32
    return %arg0, %c0_i32, %c0_i32_0 : i32, i32, i32
  }
  func.func @transform_1(%arg0: i32, %arg1: i32) -> (i32, i32, i32) {
    %c0_i32 = arith.constant 0 : i32
    %c0_i32_0 = arith.constant 0 : i32
    %c0_i32_1 = arith.constant 0 : i32
    return %arg0, %c0_i32, %c0_i32_0 : i32, i32, i32
  }
  func.func @transform_2(%arg0: i32, %arg1: i32) -> (i32, i32, i32) {
    %c0_i32 = arith.constant 0 : i32
    %c0_i32_0 = arith.constant 0 : i32
    %c0_i32_1 = arith.constant 0 : i32
    return %arg0, %c0_i32, %c0_i32_0 : i32, i32, i32
  }
  func.func @transform_3(%arg0: i32, %arg1: i32) -> (i32, i32, i32) {
    %c0_i32 = arith.constant 0 : i32
    %c0_i32_0 = arith.constant 0 : i32
    %c0_i32_1 = arith.constant 0 : i32
    return %arg0, %c0_i32, %c0_i32_0 : i32, i32, i32
  }
  func.func @transform_4(%arg0: i32, %arg1: i32) -> (i32, i32, i32) {
    %c0_i32 = arith.constant 0 : i32
    %c0_i32_0 = arith.constant 0 : i32
    %c0_i32_1 = arith.constant 0 : i32
    return %arg0, %c0_i32, %c0_i32_0 : i32, i32, i32
  }
  func.func @transform_5(%arg0: i32, %arg1: i32) -> (i32, i32, i32) {
    %c0_i32 = arith.constant 0 : i32
    %c0_i32_0 = arith.constant 0 : i32
    %c0_i32_1 = arith.constant 0 : i32
    return %arg0, %c0_i32, %c0_i32_0 : i32, i32, i32
  }
  func.func @transform_6(%arg0: i32, %arg1: i32) -> (i32, i32, i32) {
    %c0_i32 = arith.constant 0 : i32
    %c0_i32_0 = arith.constant 0 : i32
    %c0_i32_1 = arith.constant 0 : i32
    return %arg1, %c0_i32, %c0_i32_0 : i32, i32, i32
  }
  func.func @transform_7(%arg0: i32, %arg1: i32) -> (i32, i32, i32) {
    %c0_i32 = arith.constant 0 : i32
    %c0_i32_0 = arith.constant 0 : i32
    %c0_i32_1 = arith.constant 0 : i32
    return %arg1, %c0_i32, %c0_i32_0 : i32, i32, i32
  }
  func.func @transform_8(%arg0: i32, %arg1: i32) -> (i32, i32, i32) {
    %c0_i32 = arith.constant 0 : i32
    %c0_i32_0 = arith.constant 0 : i32
    %c0_i32_1 = arith.constant 0 : i32
    return %arg1, %c0_i32, %c0_i32_0 : i32, i32, i32
  }
  func.func @transform_9(%arg0: i32, %arg1: i32) -> (i32, i32, i32) {
    %c0_i32 = arith.constant 0 : i32
    %c0_i32_0 = arith.constant 0 : i32
    %c0_i32_1 = arith.constant 0 : i32
    return %arg1, %c0_i32, %c0_i32_0 : i32, i32, i32
  }
  func.func @transform_10(%arg0: i32, %arg1: i32) -> (i32, i32, i32, i32) {
    %c0_i32 = arith.constant 0 : i32
    %c0_i32_0 = arith.constant 0 : i32
    %c0_i32_1 = arith.constant 0 : i32
    %c0_i32_2 = arith.constant 0 : i32
    return %arg1, %c0_i32, %c0_i32_0, %c0_i32_1 : i32, i32, i32, i32
  }
  func.func @transform_11(%arg0: i32, %arg1: i32) -> (i32, i32, i32) {
    %c0_i32 = arith.constant 0 : i32
    %c0_i32_0 = arith.constant 0 : i32
    %c0_i32_1 = arith.constant 0 : i32
    return %arg1, %c0_i32, %c0_i32_0 : i32, i32, i32
  }
  func.func @transform_12(%arg0: i32, %arg1: i32) -> (i32, i32, i32) {
    %c0_i32 = arith.constant 0 : i32
    %c0_i32_0 = arith.constant 0 : i32
    %c0_i32_1 = arith.constant 0 : i32
    return %arg1, %c0_i32, %c0_i32_0 : i32, i32, i32
  }
  func.func @transform_13(%arg0: i32, %arg1: i32) -> (i32, i32, i32) {
    %c0_i32 = arith.constant 0 : i32
    %c0_i32_0 = arith.constant 0 : i32
    %c0_i32_1 = arith.constant 0 : i32
    return %arg1, %c0_i32, %c0_i32_0 : i32, i32, i32
  }
  func.func @transform_14(%arg0: i32, %arg1: i32) -> (i32, i32, i32) {
    %c0_i32 = arith.constant 0 : i32
    %c0_i32_0 = arith.constant 0 : i32
    %c0_i32_1 = arith.constant 0 : i32
    return %arg1, %c0_i32, %c0_i32_0 : i32, i32, i32
  }
  func.func @transform_15(%arg0: i32, %arg1: i32) -> (i32, i32, i32) {
    %c0_i32 = arith.constant 0 : i32
    %c0_i32_0 = arith.constant 0 : i32
    %c0_i32_1 = arith.constant 0 : i32
    return %arg1, %c0_i32, %c0_i32_0 : i32, i32, i32
  }
  func.func @transform_16(%arg0: i32, %arg1: i32) -> (i32, i32, i32) {
    %c0_i32 = arith.constant 0 : i32
    %c0_i32_0 = arith.constant 0 : i32
    %c0_i32_1 = arith.constant 0 : i32
    return %arg0, %c0_i32, %c0_i32_0 : i32, i32, i32
  }
}

</mosaic_0001>

<llo_original>
// kernel: dual_qk_former.1
$region0: #{dual_qk_former.1}
  #allocation0 [shape = 'u32[]', space=smem, size = 0x4, offset = 0x4, fixed_abs, tag = 'smem constant byte address 0x4 - core index']
  #allocation1 [shape = 'u32[72,128]{1,0:T(1,128)}', space=vmem, size = 0x9000, scoped, tag = 'internal scratch']
  #allocation2 [shape = 'f32[8,32]{1,0:T(8,128)}', space=vmem, size = 0x1000, scoped, tag = 'scratch operand']
  #allocation3 [shape = 'f32[8,32]{1,0:T(8,128)}', space=vmem, size = 0x1000, scoped, tag = 'scratch operand']
  %s0 = inlined_call_operand.vmem [shape: f32[2,8,32], index: 0, kind: input, shape index: {}]
  %s1 = inlined_call_operand.vmem [shape: f32[2,8,32], index: 1, kind: input, shape index: {}]
  %s2 = inlined_call_operand.vmem [shape: f32[2,8,32], index: 2, kind: input, shape index: {}]
  %s3 = inlined_call_operand.vmem [shape: f32[2,8,32], index: 3, kind: input, shape index: {}]
  %s4 = inlined_call_operand.vmem [shape: f32[2,8,32], index: 4, kind: input, shape index: {}]
  %s5 = inlined_call_operand.vmem [shape: f32[2,1,8], index: 5, kind: input, shape index: {}]
  %s6 = inlined_call_operand.vmem [shape: f32[2,7,32], index: 6, kind: input, shape index: {}]
  %s7 = inlined_call_operand.vmem [shape: f32[2,7,32], index: 7, kind: input, shape index: {}]
  %s8 = inlined_call_operand.vmem [shape: f32[2,1,64], index: 8, kind: input, shape index: {}]
  %s9 = inlined_call_operand.vmem [shape: f32[2,1,64], index: 9, kind: input, shape index: {}]
  %s10 = inlined_call_operand.vmem [shape: bf16[2,6,32,32], index: 10, kind: input, shape index: {}]
  %s11 = inlined_call_operand.vmem [shape: f32[2,6,32], index: 11, kind: input, shape index: {}]
  %s12 = inlined_call_operand.vmem [shape: bf16[2,32,64], index: 12, kind: input, shape index: {}]
  %s13 = inlined_call_operand.vmem [shape: f32[2,1,64], index: 13, kind: input, shape index: {}]
  %s14 = inlined_call_operand.vmem [shape: bf16[2,64,32], index: 14, kind: input, shape index: {}]
  %s15 = inlined_call_operand.vmem [shape: f32[2,1,32], index: 15, kind: input, shape index: {}]
  %s16 = inlined_call_operand.hbm [shape: f32[2,8,32], index: 16, kind: output, shape index: {}]
  %s17 = sld [smem:[#allocation0]]
  $region113: #{dual_qk_former.1} parent=0
    _
  %s19 = ssub.s32 1, %s17
  %s20 = scalar_select 0, %s19, %s17
  $region1: #{dual_qk_former.1} parent=0
    #allocation4 [shape = 'u8[8192]{0}', space=vmem, size = 0x2000, scoped, tag = 'output window, operand 0']
    #allocation5 [shape = 's32[2]{0}', space=sflag, size = 0x8, scoped, tag = 'scoped memory for dual_qk_former.1']
    %21 = vsyncpa [#allocation5], 0
    %s22 = scalar_lea.sflag [#allocation5], 1
    %23 = vsyncpa %s22, 0
    loop: start=0, step=1, limit=6
    $region2: #{dual_qk_former.1} parent=1 // loop_pre_header
      _
    $region3: #{dual_qk_former.1} parent=1 // loop_header
      %s25 = sphi 0, %s29
      %p26 = scmp.ge.s32.totalorder %s25, 6
      %s32 = sphi 0, %s44
      %s33 = sphi 0, %s40
      %s34 = sphi 0, %s32
      %s35 = sphi 0, %s33
      %s36 = sphi 0, %s34
      %s37 = sphi 0, %s35
      %s47 = sphi 0, %s49
      %s50 = sphi 0, %s47
      %s51 = sphi 0, %s50
      %s67 = sphi 0, %s51
      %s73 = sphi 0, %s75
      %s76 = sphi 0, %s73
      %s77 = sphi 0, %s76
      %s93 = sphi 0, %s77
      %s99 = sphi 0, %s101
      %s102 = sphi 0, %s99
      %s103 = sphi 0, %s102
      %s119 = sphi 0, %s103
      %s125 = sphi 0, %s127
      %s128 = sphi 0, %s125
      %s129 = sphi 0, %s128
      %s145 = sphi 0, %s129
      %s151 = sphi 0, %s153
      %s154 = sphi 0, %s151
      %s155 = sphi 0, %s154
      %s171 = sphi 0, %s155
      %s177 = sphi 0, %s179
      %s180 = sphi 0, %s177
      %s181 = sphi 0, %s180
      %s197 = sphi 0, %s181
      %s203 = sphi 0, %s205
      %s206 = sphi 0, %s203
      %s207 = sphi 0, %s206
      %s223 = sphi 0, %s207
      %s229 = sphi 0, %s231
      %s232 = sphi 0, %s229
      %s233 = sphi 0, %s232
      %s249 = sphi 0, %s233
      %s255 = sphi 0, %s257
      %s258 = sphi 0, %s255
      %s259 = sphi 0, %s258
      %s275 = sphi 0, %s259
      %s281 = sphi 0, %s283
      %s284 = sphi 0, %s281
      %s285 = sphi 0, %s284
      %s301 = sphi 0, %s285
      %s307 = sphi 0, %s309
      %s310 = sphi 0, %s307
      %s311 = sphi 0, %s310
      %s327 = sphi 0, %s311
      %s333 = sphi 0, %s335
      %s336 = sphi 0, %s333
      %s337 = sphi 0, %s336
      %s353 = sphi 0, %s337
      %s359 = sphi 0, %s361
      %s362 = sphi 0, %s359
      %s363 = sphi 0, %s362
      %s379 = sphi 0, %s363
      %s385 = sphi 0, %s387
      %s388 = sphi 0, %s385
      %s389 = sphi 0, %s388
      %s405 = sphi 0, %s389
      %s411 = sphi 0, %s413
      %s414 = sphi 0, %s411
      %s415 = sphi 0, %s414
      %s431 = sphi 0, %s415
      %s437 = sphi 0, %s439
      %s440 = sphi 0, %s437
      %s441 = sphi 0, %s440
      %s457 = sphi 0, %s441
      %s463 = sphi 0, %s465
      %s466 = sphi 0, %s463
      %s467 = sphi 0, %s466
      %s483 = sphi 0, %s467
    $region4: #{dual_qk_former.1} parent=1 // loop_header_branch
      %28 = sbr.rel (%p26) target = $region8
    $region5: #{dual_qk_former.1} parent=1 // loop_body
      %s30 = ssub.s32 %s25, 1
      %s31 = ssub.s32 %s25, 2
      %s38 = sadd.s32 1, %s33
      %p39 = scmp.ge.s32.totalorder %s38, 2
      %s40 = scalar_select %p39, 0, %s38
      %s41 = sadd.s32 1, %s32
      %s42 = scalar_select %p39, %s41, %s32
      %p43 = scmp.ge.s32.totalorder %s42, 2
      %s44 = scalar_select %p43, 0, %s42
      %s45 = ssub.s32 %s32, %s44
      %p46 = scmp.eq.s32.totalorder %s45, 0
      %s48 = sadd.s32 %s47, 1
      %s49 = scalar_select %p46, %s47, %s48
      %p52 = pneg %p46
      %p53 = scmp.eq.s32.totalorder %s25, 3
      %p54 = por %p52, %p53
      %p55 = scmp.ne.s32.totalorder %s47, %s50
      %p56 = scmp.eq.s32.totalorder %s25, 0
      %p57 = por %p55, %p56
      %p58 = scmp.ne.s32.totalorder %s47, %s50
      %p59 = scmp.eq.s32.totalorder %s30, 3
      %p60 = por %p58, %p59
      %p61 = scmp.ne.s32.totalorder %s50, %s51
      %p62 = scmp.eq.s32.totalorder %s30, 0
      %p63 = por %p61, %p62
      %p64 = scmp.ne.s32.totalorder %s50, %s51
      %p65 = scmp.eq.s32.totalorder %s31, 3
      %p66 = por %p64, %p65
      %p68 = scmp.ne.s32.totalorder %s51, %s67
      %p69 = scmp.eq.s32.totalorder %s31, 0
      %p70 = por %p68, %p69
      %s71 = ssub.s32 %s32, %s44
      %p72 = scmp.eq.s32.totalorder %s71, 0
      %s74 = sadd.s32 %s73, 1
      %s75 = scalar_select %p72, %s73, %s74
      %p78 = pneg %p72
      %p79 = scmp.eq.s32.totalorder %s25, 3
      %p80 = por %p78, %p79
      %p81 = scmp.ne.s32.totalorder %s73, %s76
      %p82 = scmp.eq.s32.totalorder %s25, 0
      %p83 = por %p81, %p82
      %p84 = scmp.ne.s32.totalorder %s73, %s76
      %p85 = scmp.eq.s32.totalorder %s30, 3
      %p86 = por %p84, %p85
      %p87 = scmp.ne.s32.totalorder %s76, %s77
      %p88 = scmp.eq.s32.totalorder %s30, 0
      %p89 = por %p87, %p88
      %p90 = scmp.ne.s32.totalorder %s76, %s77
      %p91 = scmp.eq.s32.totalorder %s31, 3
      %p92 = por %p90, %p91
      %p94 = scmp.ne.s32.totalorder %s77, %s93
      %p95 = scmp.eq.s32.totalorder %s31, 0
      %p96 = por %p94, %p95
      %s97 = ssub.s32 %s32, %s44
      %p98 = scmp.eq.s32.totalorder %s97, 0
      %s100 = sadd.s32 %s99, 1
      %s101 = scalar_select %p98, %s99, %s100
      %p104 = pneg %p98
      %p105 = scmp.eq.s32.totalorder %s25, 3
      %p106 = por %p104, %p105
      %p107 = scmp.ne.s32.totalorder %s99, %s102
      %p108 = scmp.eq.s32.totalorder %s25, 0
      %p109 = por %p107, %p108
      %p110 = scmp.ne.s32.totalorder %s99, %s102
      %p111 = scmp.eq.s32.totalorder %s30, 3
      %p112 = por %p110, %p111
      %p113 = scmp.ne.s32.totalorder %s102, %s103
      %p114 = scmp.eq.s32.totalorder %s30, 0
      %p115 = por %p113, %p114
      %p116 = scmp.ne.s32.totalorder %s102, %s103
      %p117 = scmp.eq.s32.totalorder %s31, 3
      %p118 = por %p116, %p117
      %p120 = scmp.ne.s32.totalorder %s103, %s119
      %p121 = scmp.eq.s32.totalorder %s31, 0
      %p122 = por %p120, %p121
      %s123 = ssub.s32 %s32, %s44
      %p124 = scmp.eq.s32.totalorder %s123, 0
      %s126 = sadd.s32 %s125, 1
      %s127 = scalar_select %p124, %s125, %s126
      %p130 = pneg %p124
      %p131 = scmp.eq.s32.totalorder %s25, 3
      %p132 = por %p130, %p131
      %p133 = scmp.ne.s32.totalorder %s125, %s128
      %p134 = scmp.eq.s32.totalorder %s25, 0
      %p135 = por %p133, %p134
      %p136 = scmp.ne.s32.totalorder %s125, %s128
      %p137 = scmp.eq.s32.totalorder %s30, 3
      %p138 = por %p136, %p137
      %p139 = scmp.ne.s32.totalorder %s128, %s129
      %p140 = scmp.eq.s32.totalorder %s30, 0
      %p141 = por %p139, %p140
      %p142 = scmp.ne.s32.totalorder %s128, %s129
      %p143 = scmp.eq.s32.totalorder %s31, 3
      %p144 = por %p142, %p143
      %p146 = scmp.ne.s32.totalorder %s129, %s145
      %p147 = scmp.eq.s32.totalorder %s31, 0
      %p148 = por %p146, %p147
      %s149 = ssub.s32 %s32, %s44
      %p150 = scmp.eq.s32.totalorder %s149, 0
      %s152 = sadd.s32 %s151, 1
      %s153 = scalar_select %p150, %s151, %s152
      %p156 = pneg %p150
      %p157 = scmp.eq.s32.totalorder %s25, 3
      %p158 = por %p156, %p157
      %p159 = scmp.ne.s32.totalorder %s151, %s154
      %p160 = scmp.eq.s32.totalorder %s25, 0
      %p161 = por %p159, %p160
      %p162 = scmp.ne.s32.totalorder %s151, %s154
      %p163 = scmp.eq.s32.totalorder %s30, 3
      %p164 = por %p162, %p163
      %p165 = scmp.ne.s32.totalorder %s154, %s155
      %p166 = scmp.eq.s32.totalorder %s30, 0
      %p167 = por %p165, %p166
      %p168 = scmp.ne.s32.totalorder %s154, %s155
      %p169 = scmp.eq.s32.totalorder %s31, 3
      %p170 = por %p168, %p169
      %p172 = scmp.ne.s32.totalorder %s155, %s171
      %p173 = scmp.eq.s32.totalorder %s31, 0
      %p174 = por %p172, %p173
      %s175 = ssub.s32 %s32, %s44
      %p176 = scmp.eq.s32.totalorder %s175, 0
      %s178 = sadd.s32 %s177, 1
      %s179 = scalar_select %p176, %s177, %s178
      %p182 = pneg %p176
      %p183 = scmp.eq.s32.totalorder %s25, 3
      %p184 = por %p182, %p183
      %p185 = scmp.ne.s32.totalorder %s177, %s180
      %p186 = scmp.eq.s32.totalorder %s25, 0
      %p187 = por %p185, %p186
      %p188 = scmp.ne.s32.totalorder %s177, %s180
      %p189 = scmp.eq.s32.totalorder %s30, 3
      %p190 = por %p188, %p189
      %p191 = scmp.ne.s32.totalorder %s180, %s181
      %p192 = scmp.eq.s32.totalorder %s30, 0
      %p193 = por %p191, %p192
      %p194 = scmp.ne.s32.totalorder %s180, %s181
      %p195 = scmp.eq.s32.totalorder %s31, 3
      %p196 = por %p194, %p195
      %p198 = scmp.ne.s32.totalorder %s181, %s197
      %p199 = scmp.eq.s32.totalorder %s31, 0
      %p200 = por %p198, %p199
      %s201 = ssub.s32 %s33, %s40
      %p202 = scmp.eq.s32.totalorder %s201, 0
      %s204 = sadd.s32 %s203, 1
      %s205 = scalar_select %p202, %s203, %s204
      %p208 = pneg %p202
      %p209 = scmp.eq.s32.totalorder %s25, 3
      %p210 = por %p208, %p209
      %p211 = scmp.ne.s32.totalorder %s203, %s206
      %p212 = scmp.eq.s32.totalorder %s25, 0
      %p213 = por %p211, %p212
      %p214 = scmp.ne.s32.totalorder %s203, %s206
      %p215 = scmp.eq.s32.totalorder %s30, 3
      %p216 = por %p214, %p215
      %p217 = scmp.ne.s32.totalorder %s206, %s207
      %p218 = scmp.eq.s32.totalorder %s30, 0
      %p219 = por %p217, %p218
      %p220 = scmp.ne.s32.totalorder %s206, %s207
      %p221 = scmp.eq.s32.totalorder %s31, 3
      %p222 = por %p220, %p221
      %p224 = scmp.ne.s32.totalorder %s207, %s223
      %p225 = scmp.eq.s32.totalorder %s31, 0
      %p226 = por %p224, %p225
      %s227 = ssub.s32 %s33, %s40
      %p228 = scmp.eq.s32.totalorder %s227, 0
      %s230 = sadd.s32 %s229, 1
      %s231 = scalar_select %p228, %s229, %s230
      %p234 = pneg %p228
      %p235 = scmp.eq.s32.totalorder %s25, 3
      %p236 = por %p234, %p235
      %p237 = scmp.ne.s32.totalorder %s229, %s232
      %p238 = scmp.eq.s32.totalorder %s25, 0
      %p239 = por %p237, %p238
      %p240 = scmp.ne.s32.totalorder %s229, %s232
      %p241 = scmp.eq.s32.totalorder %s30, 3
      %p242 = por %p240, %p241
      %p243 = scmp.ne.s32.totalorder %s232, %s233
      %p244 = scmp.eq.s32.totalorder %s30, 0
      %p245 = por %p243, %p244
      %p246 = scmp.ne.s32.totalorder %s232, %s233
      %p247 = scmp.eq.s32.totalorder %s31, 3
      %p248 = por %p246, %p247
      %p250 = scmp.ne.s32.totalorder %s233, %s249
      %p251 = scmp.eq.s32.totalorder %s31, 0
      %p252 = por %p250, %p251
      %s253 = ssub.s32 %s33, %s40
      %p254 = scmp.eq.s32.totalorder %s253, 0
      %s256 = sadd.s32 %s255, 1
      %s257 = scalar_select %p254, %s255, %s256
      %p260 = pneg %p254
      %p261 = scmp.eq.s32.totalorder %s25, 3
      %p262 = por %p260, %p261
      %p263 = scmp.ne.s32.totalorder %s255, %s258
      %p264 = scmp.eq.s32.totalorder %s25, 0
      %p265 = por %p263, %p264
      %p266 = scmp.ne.s32.totalorder %s255, %s258
      %p267 = scmp.eq.s32.totalorder %s30, 3
      %p268 = por %p266, %p267
      %p269 = scmp.ne.s32.totalorder %s258, %s259
      %p270 = scmp.eq.s32.totalorder %s30, 0
      %p271 = por %p269, %p270
      %p272 = scmp.ne.s32.totalorder %s258, %s259
      %p273 = scmp.eq.s32.totalorder %s31, 3
      %p274 = por %p272, %p273
      %p276 = scmp.ne.s32.totalorder %s259, %s275
      %p277 = scmp.eq.s32.totalorder %s31, 0
      %p278 = por %p276, %p277
      %s279 = ssub.s32 %s33, %s40
      %p280 = scmp.eq.s32.totalorder %s279, 0
      %s282 = sadd.s32 %s281, 1
      %s283 = scalar_select %p280, %s281, %s282
      %p286 = pneg %p280
      %p287 = scmp.eq.s32.totalorder %s25, 3
      %p288 = por %p286, %p287
      %p289 = scmp.ne.s32.totalorder %s281, %s284
      %p290 = scmp.eq.s32.totalorder %s25, 0
      %p291 = por %p289, %p290
      %p292 = scmp.ne.s32.totalorder %s281, %s284
      %p293 = scmp.eq.s32.totalorder %s30, 3
      %p294 = por %p292, %p293
      %p295 = scmp.ne.s32.totalorder %s284, %s285
      %p296 = scmp.eq.s32.totalorder %s30, 0
      %p297 = por %p295, %p296
      %p298 = scmp.ne.s32.totalorder %s284, %s285
      %p299 = scmp.eq.s32.totalorder %s31, 3
      %p300 = por %p298, %p299
      %p302 = scmp.ne.s32.totalorder %s285, %s301
      %p303 = scmp.eq.s32.totalorder %s31, 0
      %p304 = por %p302, %p303
      %s305 = ssub.s32 %s33, %s40
      %p306 = scmp.eq.s32.totalorder %s305, 0
      %s308 = sadd.s32 %s307, 1
      %s309 = scalar_select %p306, %s307, %s308
      %p312 = pneg %p306
      %p313 = scmp.eq.s32.totalorder %s25, 3
      %p314 = por %p312, %p313
      %p315 = scmp.ne.s32.totalorder %s307, %s310
      %p316 = scmp.eq.s32.totalorder %s25, 0
      %p317 = por %p315, %p316
      %p318 = scmp.ne.s32.totalorder %s307, %s310
      %p319 = scmp.eq.s32.totalorder %s30, 3
      %p320 = por %p318, %p319
      %p321 = scmp.ne.s32.totalorder %s310, %s311
      %p322 = scmp.eq.s32.totalorder %s30, 0
      %p323 = por %p321, %p322
      %p324 = scmp.ne.s32.totalorder %s310, %s311
      %p325 = scmp.eq.s32.totalorder %s31, 3
      %p326 = por %p324, %p325
      %p328 = scmp.ne.s32.totalorder %s311, %s327
      %p329 = scmp.eq.s32.totalorder %s31, 0
      %p330 = por %p328, %p329
      %s331 = ssub.s32 %s33, %s40
      %p332 = scmp.eq.s32.totalorder %s331, 0
      %s334 = sadd.s32 %s333, 1
      %s335 = scalar_select %p332, %s333, %s334
      %p338 = pneg %p332
      %p339 = scmp.eq.s32.totalorder %s25, 3
      %p340 = por %p338, %p339
      %p341 = scmp.ne.s32.totalorder %s333, %s336
      %p342 = scmp.eq.s32.totalorder %s25, 0
      %p343 = por %p341, %p342
      %p344 = scmp.ne.s32.totalorder %s333, %s336
      %p345 = scmp.eq.s32.totalorder %s30, 3
      %p346 = por %p344, %p345
      %p347 = scmp.ne.s32.totalorder %s336, %s337
      %p348 = scmp.eq.s32.totalorder %s30, 0
      %p349 = por %p347, %p348
      %p350 = scmp.ne.s32.totalorder %s336, %s337
      %p351 = scmp.eq.s32.totalorder %s31, 3
      %p352 = por %p350, %p351
      %p354 = scmp.ne.s32.totalorder %s337, %s353
      %p355 = scmp.eq.s32.totalorder %s31, 0
      %p356 = por %p354, %p355
      %s357 = ssub.s32 %s33, %s40
      %p358 = scmp.eq.s32.totalorder %s357, 0
      %s360 = sadd.s32 %s359, 1
      %s361 = scalar_select %p358, %s359, %s360
      %p364 = pneg %p358
      %p365 = scmp.eq.s32.totalorder %s25, 3
      %p366 = por %p364, %p365
      %p367 = scmp.ne.s32.totalorder %s359, %s362
      %p368 = scmp.eq.s32.totalorder %s25, 0
      %p369 = por %p367, %p368
      %p370 = scmp.ne.s32.totalorder %s359, %s362
      %p371 = scmp.eq.s32.totalorder %s30, 3
      %p372 = por %p370, %p371
      %p373 = scmp.ne.s32.totalorder %s362, %s363
      %p374 = scmp.eq.s32.totalorder %s30, 0
      %p375 = por %p373, %p374
      %p376 = scmp.ne.s32.totalorder %s362, %s363
      %p377 = scmp.eq.s32.totalorder %s31, 3
      %p378 = por %p376, %p377
      %p380 = scmp.ne.s32.totalorder %s363, %s379
      %p381 = scmp.eq.s32.totalorder %s31, 0
      %p382 = por %p380, %p381
      %s383 = ssub.s32 %s33, %s40
      %p384 = scmp.eq.s32.totalorder %s383, 0
      %s386 = sadd.s32 %s385, 1
      %s387 = scalar_select %p384, %s385, %s386
      %p390 = pneg %p384
      %p391 = scmp.eq.s32.totalorder %s25, 3
      %p392 = por %p390, %p391
      %p393 = scmp.ne.s32.totalorder %s385, %s388
      %p394 = scmp.eq.s32.totalorder %s25, 0
      %p395 = por %p393, %p394
      %p396 = scmp.ne.s32.totalorder %s385, %s388
      %p397 = scmp.eq.s32.totalorder %s30, 3
      %p398 = por %p396, %p397
      %p399 = scmp.ne.s32.totalorder %s388, %s389
      %p400 = scmp.eq.s32.totalorder %s30, 0
      %p401 = por %p399, %p400
      %p402 = scmp.ne.s32.totalorder %s388, %s389
      %p403 = scmp.eq.s32.totalorder %s31, 3
      %p404 = por %p402, %p403
      %p406 = scmp.ne.s32.totalorder %s389, %s405
      %p407 = scmp.eq.s32.totalorder %s31, 0
      %p408 = por %p406, %p407
      %s409 = ssub.s32 %s33, %s40
      %p410 = scmp.eq.s32.totalorder %s409, 0
      %s412 = sadd.s32 %s411, 1
      %s413 = scalar_select %p410, %s411, %s412
      %p416 = pneg %p410
      %p417 = scmp.eq.s32.totalorder %s25, 3
      %p418 = por %p416, %p417
      %p419 = scmp.ne.s32.totalorder %s411, %s414
      %p420 = scmp.eq.s32.totalorder %s25, 0
      %p421 = por %p419, %p420
      %p422 = scmp.ne.s32.totalorder %s411, %s414
      %p423 = scmp.eq.s32.totalorder %s30, 3
      %p424 = por %p422, %p423
      %p425 = scmp.ne.s32.totalorder %s414, %s415
      %p426 = scmp.eq.s32.totalorder %s30, 0
      %p427 = por %p425, %p426
      %p428 = scmp.ne.s32.totalorder %s414, %s415
      %p429 = scmp.eq.s32.totalorder %s31, 3
      %p430 = por %p428, %p429
      %p432 = scmp.ne.s32.totalorder %s415, %s431
      %p433 = scmp.eq.s32.totalorder %s31, 0
      %p434 = por %p432, %p433
      %s435 = ssub.s32 %s33, %s40
      %p436 = scmp.eq.s32.totalorder %s435, 0
      %s438 = sadd.s32 %s437, 1
      %s439 = scalar_select %p436, %s437, %s438
      %p442 = pneg %p436
      %p443 = scmp.eq.s32.totalorder %s25, 3
      %p444 = por %p442, %p443
      %p445 = scmp.ne.s32.totalorder %s437, %s440
      %p446 = scmp.eq.s32.totalorder %s25, 0
      %p447 = por %p445, %p446
      %p448 = scmp.ne.s32.totalorder %s437, %s440
      %p449 = scmp.eq.s32.totalorder %s30, 3
      %p450 = por %p448, %p449
      %p451 = scmp.ne.s32.totalorder %s440, %s441
      %p452 = scmp.eq.s32.totalorder %s30, 0
      %p453 = por %p451, %p452
      %p454 = scmp.ne.s32.totalorder %s440, %s441
      %p455 = scmp.eq.s32.totalorder %s31, 3
      %p456 = por %p454, %p455
      %p458 = scmp.ne.s32.totalorder %s441, %s457
      %p459 = scmp.eq.s32.totalorder %s31, 0
      %p460 = por %p458, %p459
      %s461 = ssub.s32 %s32, %s44
      %p462 = scmp.eq.s32.totalorder %s461, 0
      %s464 = sadd.s32 %s463, 1
      %s465 = scalar_select %p462, %s463, %s464
      %p468 = pneg %p462
      %p469 = scmp.eq.s32.totalorder %s25, 3
      %p470 = por %p468, %p469
      %p471 = scmp.ne.s32.totalorder %s463, %s466
      %p472 = scmp.eq.s32.totalorder %s25, 0
      %p473 = por %p471, %p472
      %p474 = scmp.ne.s32.totalorder %s463, %s466
      %p475 = scmp.eq.s32.totalorder %s30, 3
      %p476 = por %p474, %p475
      %p477 = scmp.ne.s32.totalorder %s466, %s467
      %p478 = scmp.eq.s32.totalorder %s30, 0
      %p479 = por %p477, %p478
      %p480 = scmp.ne.s32.totalorder %s466, %s467
      %p481 = scmp.eq.s32.totalorder %s31, 3
      %p482 = por %p480, %p481
      %p484 = scmp.ne.s32.totalorder %s467, %s483
      %p485 = scmp.eq.s32.totalorder %s31, 0
      %p486 = por %p484, %p485
      %p487 = scmp.le.s32.totalorder 1, %s25
      %p488 = scmp.lt.s32.totalorder %s25, 5
      %p489 = pnand %p487, %p488
      %p490 = pneg %p489
      // Predicated region
      $region9: #{dual_qk_former.1} parent=5 // pred_check
        _
      $region10: #{dual_qk_former.1} parent=5 // pred_check_branch
        %492 = sbr.rel (%p489) target = $region12
      $region11: #{dual_qk_former.1} parent=5 // pred_region
        %s493 = ssub.s32 %s25, 1
      $region12: #{dual_qk_former.1} parent=5 // pred_fallthru
        _
      %p494 = scmp.lt.s32.totalorder %s25, 4
      // Predicated region
      $region13: #{dual_qk_former.1} parent=5 // pred_check
        %p495 = pneg %p494
      $region14: #{dual_qk_former.1} parent=5 // pred_check_branch
        %497 = sbr.rel (%p495) target = $region16
      $region15: #{dual_qk_former.1} parent=5 // pred_region
        // Predicated region
        $region17: #{dual_qk_former.1} parent=15 // pred_check
          %p498 = pneg %p57
        $region18: #{dual_qk_former.1} parent=15 // pred_check_branch
          %500 = sbr.rel (%p498) target = $region20
        $region19: #{dual_qk_former.1} parent=15 // pred_region
          %p501 = scmp.lt.s32.totalorder %s32, 1
          %s502 = scalar_select %p501, %s32, 1
          %s503 = smul.addr %s502, 8
          %s504 = scalar_lea.vmem %s0, %s503
        $region20: #{dual_qk_former.1} parent=15 // pred_fallthru
          _
        // Predicated region
        $region21: #{dual_qk_former.1} parent=15 // pred_check
          %p505 = pneg %p83
        $region22: #{dual_qk_former.1} parent=15 // pred_check_branch
          %507 = sbr.rel (%p505) target = $region24
        $region23: #{dual_qk_former.1} parent=15 // pred_region
          %p508 = scmp.lt.s32.totalorder %s32, 1
          %s509 = scalar_select %p508, %s32, 1
          %s510 = smul.addr %s509, 8
          %s511 = scalar_lea.vmem %s1, %s510
        $region24: #{dual_qk_former.1} parent=15 // pred_fallthru
          _
        // Predicated region
        $region25: #{dual_qk_former.1} parent=15 // pred_check
          %p512 = pneg %p109
        $region26: #{dual_qk_former.1} parent=15 // pred_check_branch
          %514 = sbr.rel (%p512) target = $region28
        $region27: #{dual_qk_former.1} parent=15 // pred_region
          %p515 = scmp.lt.s32.totalorder %s32, 1
          %s516 = scalar_select %p515, %s32, 1
          %s517 = smul.addr %s516, 8
          %s518 = scalar_lea.vmem %s2, %s517
        $region28: #{dual_qk_former.1} parent=15 // pred_fallthru
          _
        // Predicated region
        $region29: #{dual_qk_former.1} parent=15 // pred_check
          %p519 = pneg %p135
        $region30: #{dual_qk_former.1} parent=15 // pred_check_branch
          %521 = sbr.rel (%p519) target = $region32
        $region31: #{dual_qk_former.1} parent=15 // pred_region
          %p522 = scmp.lt.s32.totalorder %s32, 1
          %s523 = scalar_select %p522, %s32, 1
          %s524 = smul.addr %s523, 8
          %s525 = scalar_lea.vmem %s3, %s524
        $region32: #{dual_qk_former.1} parent=15 // pred_fallthru
          _
        // Predicated region
        $region33: #{dual_qk_former.1} parent=15 // pred_check
          %p526 = pneg %p161
        $region34: #{dual_qk_former.1} parent=15 // pred_check_branch
          %528 = sbr.rel (%p526) target = $region36
        $region35: #{dual_qk_former.1} parent=15 // pred_region
          %p529 = scmp.lt.s32.totalorder %s32, 1
          %s530 = scalar_select %p529, %s32, 1
          %s531 = smul.addr %s530, 8
          %s532 = scalar_lea.vmem %s4, %s531
        $region36: #{dual_qk_former.1} parent=15 // pred_fallthru
          _
        // Predicated region
        $region37: #{dual_qk_former.1} parent=15 // pred_check
          %p533 = pneg %p187
        $region38: #{dual_qk_former.1} parent=15 // pred_check_branch
          %535 = sbr.rel (%p533) target = $region40
        $region39: #{dual_qk_former.1} parent=15 // pred_region
          %p536 = scmp.lt.s32.totalorder %s32, 1
          %s537 = scalar_select %p536, %s32, 1
          %s538 = scalar_lea.vmem %s5, %s537
        $region40: #{dual_qk_former.1} parent=15 // pred_fallthru
          _
        // Predicated region
        $region41: #{dual_qk_former.1} parent=15 // pred_check
          %p539 = pneg %p213
        $region42: #{dual_qk_former.1} parent=15 // pred_check_branch
          %541 = sbr.rel (%p539) target = $region44
        $region43: #{dual_qk_former.1} parent=15 // pred_region
          %p542 = scmp.lt.s32.totalorder %s33, 1
          %s543 = scalar_select %p542, %s33, 1
          %s544 = smul.addr %s543, 8
          %s545 = scalar_lea.vmem %s6, %s544
        $region44: #{dual_qk_former.1} parent=15 // pred_fallthru
          _
        // Predicated region
        $region45: #{dual_qk_former.1} parent=15 // pred_check
          %p546 = pneg %p239
        $region46: #{dual_qk_former.1} parent=15 // pred_check_branch
          %548 = sbr.rel (%p546) target = $region48
        $region47: #{dual_qk_former.1} parent=15 // pred_region
          %p549 = scmp.lt.s32.totalorder %s33, 1
          %s550 = scalar_select %p549, %s33, 1
          %s551 = smul.addr %s550, 8
          %s552 = scalar_lea.vmem %s7, %s551
        $region48: #{dual_qk_former.1} parent=15 // pred_fallthru
          _
        // Predicated region
        $region49: #{dual_qk_former.1} parent=15 // pred_check
          %p553 = pneg %p265
        $region50: #{dual_qk_former.1} parent=15 // pred_check_branch
          %555 = sbr.rel (%p553) target = $region52
        $region51: #{dual_qk_former.1} parent=15 // pred_region
          %p556 = scmp.lt.s32.totalorder %s33, 1
          %s557 = scalar_select %p556, %s33, 1
          %s558 = scalar_lea.vmem %s8, %s557
        $region52: #{dual_qk_former.1} parent=15 // pred_fallthru
          _
        // Predicated region
        $region53: #{dual_qk_former.1} parent=15 // pred_check
          %p559 = pneg %p291
        $region54: #{dual_qk_former.1} parent=15 // pred_check_branch
          %561 = sbr.rel (%p559) target = $region56
        $region55: #{dual_qk_former.1} parent=15 // pred_region
          %p562 = scmp.lt.s32.totalorder %s33, 1
          %s563 = scalar_select %p562, %s33, 1
          %s564 = scalar_lea.vmem %s9, %s563
        $region56: #{dual_qk_former.1} parent=15 // pred_fallthru
          _
        // Predicated region
        $region57: #{dual_qk_former.1} parent=15 // pred_check
          %p565 = pneg %p317
        $region58: #{dual_qk_former.1} parent=15 // pred_check_branch
          %567 = sbr.rel (%p565) target = $region60
        $region59: #{dual_qk_former.1} parent=15 // pred_region
          %p568 = scmp.lt.s32.totalorder %s33, 1
          %s569 = scalar_select %p568, %s33, 1
          %s570 = smul.addr %s569, 24
          %s571 = smul.addr %s570, 4
          %s572 = scalar_lea.vmem %s10, %s571
        $region60: #{dual_qk_former.1} parent=15 // pred_fallthru
          _
        // Predicated region
        $region61: #{dual_qk_former.1} parent=15 // pred_check
          %p573 = pneg %p343
        $region62: #{dual_qk_former.1} parent=15 // pred_check_branch
          %575 = sbr.rel (%p573) target = $region64
        $region63: #{dual_qk_former.1} parent=15 // pred_region
          %p576 = scmp.lt.s32.totalorder %s33, 1
          %s577 = scalar_select %p576, %s33, 1
          %s578 = smul.addr %s577, 8
          %s579 = scalar_lea.vmem %s11, %s578
        $region64: #{dual_qk_former.1} parent=15 // pred_fallthru
          _
        // Predicated region
        $region65: #{dual_qk_former.1} parent=15 // pred_check
          %p580 = pneg %p369
        $region66: #{dual_qk_former.1} parent=15 // pred_check_branch
          %582 = sbr.rel (%p580) target = $region68
        $region67: #{dual_qk_former.1} parent=15 // pred_region
          %p583 = scmp.lt.s32.totalorder %s33, 1
          %s584 = scalar_select %p583, %s33, 1
          %s585 = smul.addr %s584, 4
          %s586 = smul.addr %s585, 4
          %s587 = scalar_lea.vmem %s12, %s586
        $region68: #{dual_qk_former.1} parent=15 // pred_fallthru
          _
        // Predicated region
        $region69: #{dual_qk_former.1} parent=15 // pred_check
          %p588 = pneg %p395
        $region70: #{dual_qk_former.1} parent=15 // pred_check_branch
          %590 = sbr.rel (%p588) target = $region72
        $region71: #{dual_qk_former.1} parent=15 // pred_region
          %p591 = scmp.lt.s32.totalorder %s33, 1
          %s592 = scalar_select %p591, %s33, 1
          %s593 = scalar_lea.vmem %s13, %s592
        $region72: #{dual_qk_former.1} parent=15 // pred_fallthru
          _
        // Predicated region
        $region73: #{dual_qk_former.1} parent=15 // pred_check
          %p594 = pneg %p421
        $region74: #{dual_qk_former.1} parent=15 // pred_check_branch
          %596 = sbr.rel (%p594) target = $region76
        $region75: #{dual_qk_former.1} parent=15 // pred_region
          %p597 = scmp.lt.s32.totalorder %s33, 1
          %s598 = scalar_select %p597, %s33, 1
          %s599 = smul.addr %s598, 8
          %s600 = smul.addr %s599, 4
          %s601 = scalar_lea.vmem %s14, %s600
        $region76: #{dual_qk_former.1} parent=15 // pred_fallthru
          _
        // Predicated region
        $region77: #{dual_qk_former.1} parent=15 // pred_check
          %p602 = pneg %p447
        $region78: #{dual_qk_former.1} parent=15 // pred_check_branch
          %604 = sbr.rel (%p602) target = $region80
        $region79: #{dual_qk_former.1} parent=15 // pred_region
          %p605 = scmp.lt.s32.totalorder %s33, 1
          %s606 = scalar_select %p605, %s33, 1
          %s607 = scalar_lea.vmem %s15, %s606
        $region80: #{dual_qk_former.1} parent=15 // pred_fallthru
          _
      $region16: #{dual_qk_former.1} parent=5 // pred_fallthru
        _
      %p608 = scmp.le.s32.totalorder 1, %s25
      %p609 = scmp.lt.s32.totalorder %s25, 5
      %p610 = pnand %p608, %p609
      %p611 = pneg %p610
      // Predicated region
      $region81: #{dual_qk_former.1} parent=5 // pred_check
        _
      $region82: #{dual_qk_former.1} parent=5 // pred_check_branch
        %613 = sbr.rel (%p610) target = $region84
      $region83: #{dual_qk_former.1} parent=5 // pred_region
        %s614 = ssub.s32 %s25, 1
        %p615 = scmp.lt.s32.totalorder %s34, 1
        %s616 = scalar_select %p615, %s34, 1
        %s617 = smul.addr %s616, 8
        %s618 = scalar_lea.vmem %s0, %s617
        %p619 = pneg %p63
        %p620 = pneg %p60
        %p621 = scmp.lt.s32.totalorder %s34, 1
        %s622 = scalar_select %p621, %s34, 1
        %s623 = smul.addr %s622, 8
        %s624 = scalar_lea.vmem %s1, %s623
        %p625 = pneg %p89
        %p626 = pneg %p86
        %p627 = scmp.lt.s32.totalorder %s34, 1
        %s628 = scalar_select %p627, %s34, 1
        %s629 = smul.addr %s628, 8
        %s630 = scalar_lea.vmem %s2, %s629
        %p631 = pneg %p115
        %p632 = pneg %p112
        %p633 = scmp.lt.s32.totalorder %s34, 1
        %s634 = scalar_select %p633, %s34, 1
        %s635 = smul.addr %s634, 8
        %s636 = scalar_lea.vmem %s3, %s635
        %p637 = pneg %p141
        %p638 = pneg %p138
        %p639 = scmp.lt.s32.totalorder %s34, 1
        %s640 = scalar_select %p639, %s34, 1
        %s641 = smul.addr %s640, 8
        %s642 = scalar_lea.vmem %s4, %s641
        %p643 = pneg %p167
        %p644 = pneg %p164
        %p645 = scmp.lt.s32.totalorder %s34, 1
        %s646 = scalar_select %p645, %s34, 1
        %s647 = scalar_lea.vmem %s5, %s646
        %p648 = pneg %p193
        %p649 = pneg %p190
        %p650 = scmp.lt.s32.totalorder %s35, 1
        %s651 = scalar_select %p650, %s35, 1
        %s652 = smul.addr %s651, 8
        %s653 = scalar_lea.vmem %s6, %s652
        %p654 = pneg %p219
        %p655 = pneg %p216
        %p656 = scmp.lt.s32.totalorder %s35, 1
        %s657 = scalar_select %p656, %s35, 1
        %s658 = smul.addr %s657, 8
        %s659 = scalar_lea.vmem %s7, %s658
        %p660 = pneg %p245
        %p661 = pneg %p242
        %p662 = scmp.lt.s32.totalorder %s35, 1
        %s663 = scalar_select %p662, %s35, 1
        %s664 = scalar_lea.vmem %s8, %s663
        %p665 = pneg %p271
        %p666 = pneg %p268
        %p667 = scmp.lt.s32.totalorder %s35, 1
        %s668 = scalar_select %p667, %s35, 1
        %s669 = scalar_lea.vmem %s9, %s668
        %p670 = pneg %p297
        %p671 = pneg %p294
        %p672 = scmp.lt.s32.totalorder %s35, 1
        %s673 = scalar_select %p672, %s35, 1
        %s674 = smul.addr %s673, 24
        %s675 = smul.addr %s674, 4
        %s676 = scalar_lea.vmem %s10, %s675
        %p677 = pneg %p323
        %p678 = pneg %p320
        %p679 = scmp.lt.s32.totalorder %s35, 1
        %s680 = scalar_select %p679, %s35, 1
        %s681 = smul.addr %s680, 8
        %s682 = scalar_lea.vmem %s11, %s681
        %p683 = pneg %p349
        %p684 = pneg %p346
        %p685 = scmp.lt.s32.totalorder %s35, 1
        %s686 = scalar_select %p685, %s35, 1
        %s687 = smul.addr %s686, 4
        %s688 = smul.addr %s687, 4
        %s689 = scalar_lea.vmem %s12, %s688
        %p690 = pneg %p375
        %p691 = pneg %p372
        %p692 = scmp.lt.s32.totalorder %s35, 1
        %s693 = scalar_select %p692, %s35, 1
        %s694 = scalar_lea.vmem %s13, %s693
        %p695 = pneg %p401
        %p696 = pneg %p398
        %p697 = scmp.lt.s32.totalorder %s35, 1
        %s698 = scalar_select %p697, %s35, 1
        %s699 = smul.addr %s698, 8
        %s700 = smul.addr %s699, 4
        %s701 = scalar_lea.vmem %s14, %s700
        %p702 = pneg %p427
        %p703 = pneg %p424
        %p704 = scmp.lt.s32.totalorder %s35, 1
        %s705 = scalar_select %p704, %s35, 1
        %s706 = scalar_lea.vmem %s15, %s705
        %p707 = pneg %p453
        %p708 = pneg %p450
        %p709 = pneg %p479
        %p710 = pneg %p476
        %s711 = sand.u32 %s466, 1
        %s712 = scalar_lea.sflag [#allocation5], %s711
        %s713 = sand.u32 %s466, 1
        %s714 = smul.addr %s713, 8
        %s715 = scalar_lea.vmem [#allocation4], %s714
        %p716 = scmp.lt.s32.totalorder %s34, 1
        %s717 = scalar_select %p716, %s34, 1
        %s718 = smul.addr %s717, 8
        %s719 = scalar_lea.vmem %s0, %s718
        %p720 = scmp.lt.s32.totalorder %s34, 1
        %s721 = scalar_select %p720, %s34, 1
        %s722 = smul.addr %s721, 8
        %s723 = scalar_lea.vmem %s1, %s722
        %p724 = scmp.lt.s32.totalorder %s34, 1
        %s725 = scalar_select %p724, %s34, 1
        %s726 = smul.addr %s725, 8
        %s727 = scalar_lea.vmem %s2, %s726
        %p728 = scmp.lt.s32.totalorder %s34, 1
        %s729 = scalar_select %p728, %s34, 1
        %s730 = smul.addr %s729, 8
        %s731 = scalar_lea.vmem %s3, %s730
        %p732 = scmp.lt.s32.totalorder %s34, 1
        %s733 = scalar_select %p732, %s34, 1
        %s734 = smul.addr %s733, 8
        %s735 = scalar_lea.vmem %s4, %s734
        %p736 = scmp.lt.s32.totalorder %s34, 1
        %s737 = scalar_select %p736, %s34, 1
        %s738 = scalar_lea.vmem %s5, %s737
        %p739 = scmp.lt.s32.totalorder %s35, 1
        %s740 = scalar_select %p739, %s35, 1
        %s741 = smul.addr %s740, 8
        %s742 = scalar_lea.vmem %s6, %s741
        %p743 = scmp.lt.s32.totalorder %s35, 1
        %s744 = scalar_select %p743, %s35, 1
        %s745 = smul.addr %s744, 8
        %s746 = scalar_lea.vmem %s7, %s745
        %p747 = scmp.lt.s32.totalorder %s35, 1
        %s748 = scalar_select %p747, %s35, 1
        %s749 = scalar_lea.vmem %s8, %s748
        %p750 = scmp.lt.s32.totalorder %s35, 1
        %s751 = scalar_select %p750, %s35, 1
        %s752 = scalar_lea.vmem %s9, %s751
        %p753 = scmp.lt.s32.totalorder %s35, 1
        %s754 = scalar_select %p753, %s35, 1
        %s755 = smul.addr %s754, 24
        %s756 = smul.addr %s755, 4
        %s757 = scalar_lea.vmem %s10, %s756
        %p758 = scmp.lt.s32.totalorder %s35, 1
        %s759 = scalar_select %p758, %s35, 1
        %s760 = smul.addr %s759, 8
        %s761 = scalar_lea.vmem %s11, %s760
        %p762 = scmp.lt.s32.totalorder %s35, 1
        %s763 = scalar_select %p762, %s35, 1
        %s764 = smul.addr %s763, 4
        %s765 = smul.addr %s764, 4
        %s766 = scalar_lea.vmem %s12, %s765
        %p767 = scmp.lt.s32.totalorder %s35, 1
        %s768 = scalar_select %p767, %s35, 1
        %s769 = scalar_lea.vmem %s13, %s768
        %p770 = scmp.lt.s32.totalorder %s35, 1
        %s771 = scalar_select %p770, %s35, 1
        %s772 = smul.addr %s771, 8
        %s773 = smul.addr %s772, 4
        %s774 = scalar_lea.vmem %s14, %s773
        %p775 = scmp.lt.s32.totalorder %s35, 1
        %s776 = scalar_select %p775, %s35, 1
        %s777 = scalar_lea.vmem %s15, %s776
        %p779 = scmp.eq.s32.totalorder %s35, 0
        // Predicated region
        $region85: #{dual_qk_former.1} parent=83 // pred_check
          %p780 = pneg %p779
        $region86: #{dual_qk_former.1} parent=83 // pred_check_branch
          %782 = sbr.rel (%p780) target = $region88
        $region87: #{dual_qk_former.1} parent=83 // pred_region
          %v783 = vld [vmem:[%s735] sm:$0xff]
          %vm784 = vcmask 261120
          %785 = vst.msk [vmem:[#allocation2] sm:$0xff] %vm784, %v783
        $region88: #{dual_qk_former.1} parent=83 // pred_fallthru
          _
        %v786 = vld [vmem:[#allocation2] sm:$0xff]
        %v787 = vld [vmem:[%s738] sm:$0x1]
        %v788 = vld [vmem:[%s719] sm:$0xff]
        %v789 = vld [vmem:[%s742] sm:$0x1]
        %v790 = vld [vmem:[%s746] sm:$0x1]
        %vm791 = vcmask 261120
        %v792 = vsel %vm791, %v788, 0.0
        %793 = vadd.xlane.f32.xlu0 %v792
        %v794 = vpop.xlane.xlu0 %793
        %v795 = vrcp.pop 32.0
        %v796 = vmul.f32 32.0, %v795
        %v797 = vsub.f32 1.0, %v796
        %v798 = vmul.f32 %v795, %v797
        %v799 = vadd.f32 %v795, %v798
        %vm800 = vweird.f32 %v795
        %v801 = vsel %vm800, %v795, %v799
        %v802 = vmul.f32 %v794, %v801
        %v803 = vsub.f32 %v788, %v802
        %v804 = vmul.f32 %v803, %v803
        %v805 = vsel %vm791, %v804, 0.0
        %806 = vadd.xlane.f32.xlu0 %v805
        %v807 = vpop.xlane.xlu0 %806
        %v808 = vmul.f32 %v807, %v801
        %v809 = vadd.f32 %v808, 1e-12
        %v810 = vrsqrt.pop %v809
        %v811 = vmul.f32 %v810, %v809
        %v812 = vmul.f32 %v811, %v810
        %v813 = vmul.f32 0.5, %v812
        %v814 = vsub.f32 1.5, %v813
        %v815 = vmul.f32 %v810, %v814
        %vm816 = vweird.f32 %v809
        %vm817 = vweird.f32 %v810
        %vm818 = vmor %vm816, %vm817
        %v819 = vsel %vm818, %v810, %v815
        %v820 = vmul.f32 %v803, %v819
        %v821 = vperm.slane %v789, 0
        %v822 = vmul.f32 %v820, %v821
        %v823 = vperm.slane %v790, 0
        %v824 = vadd.f32 %v822, %v823
        %v825 = vpack.c.bf16 %v824, %v824
        %v826 = vld [vmem:[%s723] sm:$0xff]
        %v827 = vld [vmem:[%s742 + $0x1] sm:$0x1]
        %v828 = vld [vmem:[%s746 + $0x1] sm:$0x1]
        %v829 = vsel %vm791, %v826, 0.0
        %830 = vadd.xlane.f32.xlu0 %v829
        %v831 = vpop.xlane.xlu0 %830
        %v832 = vmul.f32 %v831, %v801
        %v833 = vsub.f32 %v826, %v832
        %v834 = vmul.f32 %v833, %v833
        %v835 = vsel %vm791, %v834, 0.0
        %836 = vadd.xlane.f32.xlu0 %v835
        %v837 = vpop.xlane.xlu0 %836
        %v838 = vmul.f32 %v837, %v801
        %v839 = vadd.f32 %v838, 1e-12
        %v840 = vrsqrt.pop %v839
        %v841 = vmul.f32 %v840, %v839
        %v842 = vmul.f32 %v841, %v840
        %v843 = vmul.f32 0.5, %v842
        %v844 = vsub.f32 1.5, %v843
        %v845 = vmul.f32 %v840, %v844
        %vm846 = vweird.f32 %v839
        %vm847 = vweird.f32 %v840
        %vm848 = vmor %vm846, %vm847
        %v849 = vsel %vm848, %v840, %v845
        %v850 = vmul.f32 %v833, %v849
        %v851 = vperm.slane %v827, 0
        %v852 = vmul.f32 %v850, %v851
        %v853 = vperm.slane %v828, 0
        %v854 = vadd.f32 %v852, %v853
        %v855 = vpack.c.bf16 %v854, %v854
        %v856 = vld [vmem:[%s727] sm:$0xff]
        %v857 = vld [vmem:[%s742 + $0x2] sm:$0x1]
        %v858 = vld [vmem:[%s746 + $0x2] sm:$0x1]
        %v859 = vsel %vm791, %v856, 0.0
        %860 = vadd.xlane.f32.xlu0 %v859
        %v861 = vpop.xlane.xlu0 %860
        %v862 = vmul.f32 %v861, %v801
        %v863 = vsub.f32 %v856, %v862
        %v864 = vmul.f32 %v863, %v863
        %v865 = vsel %vm791, %v864, 0.0
        %866 = vadd.xlane.f32.xlu0 %v865
        %v867 = vpop.xlane.xlu0 %866
        %v868 = vmul.f32 %v867, %v801
        %v869 = vadd.f32 %v868, 1e-12
        %v870 = vrsqrt.pop %v869
        %v871 = vmul.f32 %v870, %v869
        %v872 = vmul.f32 %v871, %v870
        %v873 = vmul.f32 0.5, %v872
        %v874 = vsub.f32 1.5, %v873
        %v875 = vmul.f32 %v870, %v874
        %vm876 = vweird.f32 %v869
        %vm877 = vweird.f32 %v870
        %vm878 = vmor %vm876, %vm877
        %v879 = vsel %vm878, %v870, %v875
        %v880 = vmul.f32 %v863, %v879
        %v881 = vperm.slane %v857, 0
        %v882 = vmul.f32 %v880, %v881
        %v883 = vperm.slane %v858, 0
        %v884 = vadd.f32 %v882, %v883
        %v885 = vpack.c.bf16 %v884, %v884
        %v886 = vld [vmem:[%s731] sm:$0xff]
        %v887 = vld [vmem:[%s742 + $0x3] sm:$0x1]
        %v888 = vld [vmem:[%s746 + $0x3] sm:$0x1]
        %v889 = vsel %vm791, %v886, 0.0
        %890 = vadd.xlane.f32.xlu0 %v889
        %v891 = vpop.xlane.xlu0 %890
        %v892 = vmul.f32 %v891, %v801
        %v893 = vsub.f32 %v886, %v892
        %v894 = vmul.f32 %v893, %v893
        %v895 = vsel %vm791, %v894, 0.0
        %896 = vadd.xlane.f32.xlu0 %v895
        %v897 = vpop.xlane.xlu0 %896
        %v898 = vmul.f32 %v897, %v801
        %v899 = vadd.f32 %v898, 1e-12
        %v900 = vrsqrt.pop %v899
        %v901 = vmul.f32 %v900, %v899
        %v902 = vmul.f32 %v901, %v900
        %v903 = vmul.f32 0.5, %v902
        %v904 = vsub.f32 1.5, %v903
        %v905 = vmul.f32 %v900, %v904
        %vm906 = vweird.f32 %v899
        %vm907 = vweird.f32 %v900
        %vm908 = vmor %vm906, %vm907
        %v909 = vsel %vm908, %v900, %v905
        %v910 = vmul.f32 %v893, %v909
        %v911 = vperm.slane %v887, 0
        %v912 = vmul.f32 %v910, %v911
        %v913 = vperm.slane %v888, 0
        %v914 = vadd.f32 %v912, %v913
        %v915 = vpack.c.bf16 %v914, %v914
        %v916 = vld [vmem:[%s742 + $0x4] sm:$0x1]
        %v917 = vld [vmem:[%s746 + $0x4] sm:$0x1]
        %v918 = vsel %vm791, %v786, 0.0
        %919 = vadd.xlane.f32.xlu0 %v918
        %v920 = vpop.xlane.xlu0 %919
        %v921 = vmul.f32 %v920, %v801
        %v922 = vsub.f32 %v786, %v921
        %v923 = vmul.f32 %v922, %v922
        %v924 = vsel %vm791, %v923, 0.0
        %925 = vadd.xlane.f32.xlu0 %v924
        %v926 = vpop.xlane.xlu0 %925
        %v927 = vmul.f32 %v926, %v801
        %v928 = vadd.f32 %v927, 1e-12
        %v929 = vrsqrt.pop %v928
        %v930 = vmul.f32 %v929, %v928
        %v931 = vmul.f32 %v930, %v929
        %v932 = vmul.f32 0.5, %v931
        %v933 = vsub.f32 1.5, %v932
        %v934 = vmul.f32 %v929, %v933
        %vm935 = vweird.f32 %v928
        %vm936 = vweird.f32 %v929
        %vm937 = vmor %vm935, %vm936
        %v938 = vsel %vm937, %v929, %v934
        %v939 = vmul.f32 %v922, %v938
        %v940 = vperm.slane %v916, 0
        %v941 = vmul.f32 %v939, %v940
        %v942 = vperm.slane %v917, 0
        %v943 = vadd.f32 %v941, %v942
        %v944 = vpack.c.bf16 %v943, %v943
        %v945 = vld [vmem:[%s757] sm:$0xf]
        %v946 = vld [vmem:[%s757 + $0x4] sm:$0xf]
        %v947 = vld [vmem:[%s757 + $0x8] sm:$0xf]
        %v948 = vld [vmem:[%s757 + $0xc] sm:$0xf]
        %v949 = vld [vmem:[%s761] sm:$0x1]
        %v950 = vperm.slane %v949, 0
        %v955 = vunpack.c.l.b16 %v945
        %v956 = vunpack.c.l.b16 %v946
        %v957 = vunpack.c.l.b16 %v947
        %v958 = vunpack.c.l.b16 %v948
        %v959 = vpack.c.b16 %v956, %v955
        %v960 = vpack.c.b16 %v958, %v957
        %v964 = vsel %vm791, %v825, 0
        %966 = vmatpush.bf16.msra.mxu0 0
        %967 = vmatpush.bf16.msra.mxu0 0
        %968 = vmatpush.bf16.msra.mxu0 0
        %969 = vmatpush.bf16.msra.mxu0 0
        %970 = vmatpush.bf16.msra.mxu0 0
        %971 = vmatpush.bf16.msra.mxu0 0
        %972 = vmatpush.bf16.msra.mxu0 %v960
        %973 = vmatpush.bf16.msra.mxu0 %v959
        %974 = vmatmul.bf16.gmra.mxu0 %v964
        %v975 = vpop.f32.mrf.mxu0
        %v976 = vadd.f32 %v950, %v975
        %v977 = vpop.f32.mrf.mxu0
        %978 = vdwg.mxu0
        %s979 = scalar_lea.vmem %s757, 16
        %v980 = vld [vmem:[%s979] sm:$0xf]
        %v981 = vld [vmem:[%s979 + $0x4] sm:$0xf]
        %v982 = vld [vmem:[%s979 + $0x8] sm:$0xf]
        %v983 = vld [vmem:[%s979 + $0xc] sm:$0xf]
        %v984 = vld [vmem:[%s761 + $0x1] sm:$0x1]
        %v985 = vperm.slane %v984, 0
        %v990 = vunpack.c.l.b16 %v980
        %v991 = vunpack.c.l.b16 %v981
        %v992 = vunpack.c.l.b16 %v982
        %v993 = vunpack.c.l.b16 %v983
        %v994 = vpack.c.b16 %v991, %v990
        %v995 = vpack.c.b16 %v993, %v992
        %v999 = vsel %vm791, %v855, 0
        %1001 = vmatpush.bf16.msra.mxu0 0
        %1002 = vmatpush.bf16.msra.mxu0 0
        %1003 = vmatpush.bf16.msra.mxu0 0
        %1004 = vmatpush.bf16.msra.mxu0 0
        %1005 = vmatpush.bf16.msra.mxu0 0
        %1006 = vmatpush.bf16.msra.mxu0 0
        %1007 = vmatpush.bf16.msra.mxu0 %v995
        %1008 = vmatpush.bf16.msra.mxu0 %v994
        %1009 = vmatmul.bf16.gmra.mxu0 %v999
        %v1010 = vpop.f32.mrf.mxu0
        %v1011 = vadd.f32 %v985, %v1010
        %v1012 = vpop.f32.mrf.mxu0
        %1013 = vdwg.mxu0
        %s1014 = scalar_lea.vmem %s757, 32
        %v1015 = vld [vmem:[%s1014] sm:$0xf]
        %v1016 = vld [vmem:[%s1014 + $0x4] sm:$0xf]
        %v1017 = vld [vmem:[%s1014 + $0x8] sm:$0xf]
        %v1018 = vld [vmem:[%s1014 + $0xc] sm:$0xf]
        %v1019 = vld [vmem:[%s761 + $0x2] sm:$0x1]
        %v1020 = vperm.slane %v1019, 0
        %v1025 = vunpack.c.l.b16 %v1015
        %v1026 = vunpack.c.l.b16 %v1016
        %v1027 = vunpack.c.l.b16 %v1017
        %v1028 = vunpack.c.l.b16 %v1018
        %v1029 = vpack.c.b16 %v1026, %v1025
        %v1030 = vpack.c.b16 %v1028, %v1027
        %v1034 = vsel %vm791, %v885, 0
        %1036 = vmatpush.bf16.msra.mxu0 0
        %1037 = vmatpush.bf16.msra.mxu0 0
        %1038 = vmatpush.bf16.msra.mxu0 0
        %1039 = vmatpush.bf16.msra.mxu0 0
        %1040 = vmatpush.bf16.msra.mxu0 0
        %1041 = vmatpush.bf16.msra.mxu0 0
        %1042 = vmatpush.bf16.msra.mxu0 %v1030
        %1043 = vmatpush.bf16.msra.mxu0 %v1029
        %1044 = vmatmul.bf16.gmra.mxu0 %v1034
        %v1045 = vpop.f32.mrf.mxu0
        %v1046 = vadd.f32 %v1020, %v1045
        %v1047 = vpop.f32.mrf.mxu0
        %1048 = vdwg.mxu0
        %s1049 = scalar_lea.vmem %s757, 48
        %v1050 = vld [vmem:[%s1049] sm:$0xf]
        %v1051 = vld [vmem:[%s1049 + $0x4] sm:$0xf]
        %v1052 = vld [vmem:[%s1049 + $0x8] sm:$0xf]
        %v1053 = vld [vmem:[%s1049 + $0xc] sm:$0xf]
        %v1054 = vld [vmem:[%s761 + $0x3] sm:$0x1]
        %v1055 = vperm.slane %v1054, 0
        %v1060 = vunpack.c.l.b16 %v1050
        %v1061 = vunpack.c.l.b16 %v1051
        %v1062 = vunpack.c.l.b16 %v1052
        %v1063 = vunpack.c.l.b16 %v1053
        %v1064 = vpack.c.b16 %v1061, %v1060
        %v1065 = vpack.c.b16 %v1063, %v1062
        %v1069 = vsel %vm791, %v915, 0
        %1071 = vmatpush.bf16.msra.mxu0 0
        %1072 = vmatpush.bf16.msra.mxu0 0
        %1073 = vmatpush.bf16.msra.mxu0 0
        %1074 = vmatpush.bf16.msra.mxu0 0
        %1075 = vmatpush.bf16.msra.mxu0 0
        %1076 = vmatpush.bf16.msra.mxu0 0
        %1077 = vmatpush.bf16.msra.mxu0 %v1065
        %1078 = vmatpush.bf16.msra.mxu0 %v1064
        %1079 = vmatmul.bf16.gmra.mxu0 %v1069
        %v1080 = vpop.f32.mrf.mxu0
        %v1081 = vadd.f32 %v1055, %v1080
        %v1082 = vpop.f32.mrf.mxu0
        %1083 = vdwg.mxu0
        %s1084 = scalar_lea.vmem %s757, 64
        %v1085 = vld [vmem:[%s1084] sm:$0xf]
        %v1086 = vld [vmem:[%s1084 + $0x4] sm:$0xf]
        %v1087 = vld [vmem:[%s1084 + $0x8] sm:$0xf]
        %v1088 = vld [vmem:[%s1084 + $0xc] sm:$0xf]
        %v1089 = vld [vmem:[%s761 + $0x4] sm:$0x1]
        %v1090 = vperm.slane %v1089, 0
        %v1095 = vunpack.c.l.b16 %v1085
        %v1096 = vunpack.c.l.b16 %v1086
        %v1097 = vunpack.c.l.b16 %v1087
        %v1098 = vunpack.c.l.b16 %v1088
        %v1099 = vpack.c.b16 %v1096, %v1095
        %v1100 = vpack.c.b16 %v1098, %v1097
        %v1104 = vsel %vm791, %v944, 0
        %1106 = vmatpush.bf16.msra.mxu0 0
        %1107 = vmatpush.bf16.msra.mxu0 0
        %1108 = vmatpush.bf16.msra.mxu0 0
        %1109 = vmatpush.bf16.msra.mxu0 0
        %1110 = vmatpush.bf16.msra.mxu0 0
        %1111 = vmatpush.bf16.msra.mxu0 0
        %1112 = vmatpush.bf16.msra.mxu0 %v1100
        %1113 = vmatpush.bf16.msra.mxu0 %v1099
        %1114 = vmatmul.bf16.gmra.mxu0 %v1104
        %v1115 = vpop.f32.mrf.mxu0
        %v1116 = vadd.f32 %v1090, %v1115
        %v1117 = vpop.f32.mrf.mxu0
        %1118 = vdwg.mxu0
        %v1119 = vmul.f32 %v976, 0.35355338
        %v1120 = vpack.c.bf16 %v1119, %v1119
        %v1121 = vmul.f32 %v1046, 0.35355338
        %v1122 = vpack.c.bf16 %v1121, %v1121
        %v1123 = vpack.c.bf16 %v1011, %v1011
        %v1124 = vpack.c.bf16 %v1081, %v1081
        %v1125 = vpack.c.bf16 %v1116, %v1116
        %v1127 = vperm.slane %v787, 0
        %vm1129 = vcmask 64512
        %v1131 = vsel %vm1129, %v1120, 0
        %v1134 = vsel %vm1129, %v1123, 0
        %1136 = vmatpush.bf16.xpose.msra.mxu0 0
        %1137 = vmatpush.bf16.xpose.msra.mxu0 0
        %1138 = vmatpush.bf16.xpose.msra.mxu0 0
        %1139 = vmatpush.bf16.xpose.msra.mxu0 0
        %1140 = vmatpush.bf16.xpose.msra.mxu0 0
        %1141 = vmatpush.bf16.xpose.msra.mxu0 0
        %1142 = vmatpush.bf16.xpose.msra.mxu0 0
        %1143 = vmatpush.bf16.xpose.msra.mxu0 %v1134
        %1144 = vmatmul.bf16.gmra.mxu0 %v1131
        %v1145 = vpop.f32.mrf.mxu0
        %v1146 = vadd.f32 %v1127, %v1145
        %v1147 = vpop.f32.mrf.mxu0
        %1148 = vdwg.mxu0
        %v1150 = vsel %vm1129, %v1122, 0
        %v1153 = vsel %vm1129, %v1124, 0
        %1155 = vmatpush.bf16.xpose.msra.mxu0 0
        %1156 = vmatpush.bf16.xpose.msra.mxu0 0
        %1157 = vmatpush.bf16.xpose.msra.mxu0 0
        %1158 = vmatpush.bf16.xpose.msra.mxu0 0
        %1159 = vmatpush.bf16.xpose.msra.mxu0 0
        %1160 = vmatpush.bf16.xpose.msra.mxu0 0
        %1161 = vmatpush.bf16.xpose.msra.mxu0 0
        %1162 = vmatpush.bf16.xpose.msra.mxu0 %v1153
        %1163 = vmatmul.bf16.gmra.mxu0 %v1150
        %v1164 = vpop.f32.mrf.mxu0
        %v1165 = vadd.f32 %v1127, %v1164
        %v1166 = vpop.f32.mrf.mxu0
        %1167 = vdwg.mxu0
        %v1168 = vsel %vm1129, %v1146, -inf
        %1169 = vmax.xlane.f32.xlu0 %v1168
        %v1170 = vpop.xlane.xlu0 %1169
        %v1171 = vsub.f32 %v1146, %v1170
        %v1172 = vmul.f32 %v1171, 1.442695
        %v1173 = vpow.pop %v1172
        %v1174 = vsel %vm1129, %v1173, 0.0
        %1175 = vadd.xlane.f32.xlu0 %v1174
        %v1176 = vpop.xlane.xlu0 %1175
        %v1177 = vrcp.pop %v1176
        %v1178 = vmul.f32 %v1173, %v1177
        %v1179 = vsel %vm1129, %v1165, -inf
        %1180 = vmax.xlane.f32.xlu0 %v1179
        %v1181 = vpop.xlane.xlu0 %1180
        %v1182 = vsub.f32 %v1165, %v1181
        %v1183 = vmul.f32 %v1182, 1.442695
        %v1184 = vpow.pop %v1183
        %v1185 = vsel %vm1129, %v1184, 0.0
        %1186 = vadd.xlane.f32.xlu0 %v1185
        %v1187 = vpop.xlane.xlu0 %1186
        %v1188 = vrcp.pop %v1187
        %v1189 = vmul.f32 %v1184, %v1188
        %v1190 = vadd.f32 %v1178, %v1189
        %v1191 = vpack.c.bf16 %v1190, %v1190
        %v1193 = vsel %vm1129, %v1191, 0
        %vm1195 = vcmask 1043456
        %v1197 = vsel %vm1195, %v1125, 0
        %1199 = vmatpush.bf16.msra.mxu0 0
        %1200 = vmatpush.bf16.msra.mxu0 0
        %1201 = vmatpush.bf16.msra.mxu0 0
        %1202 = vmatpush.bf16.msra.mxu0 0
        %1203 = vmatpush.bf16.msra.mxu0 0
        %1204 = vmatpush.bf16.msra.mxu0 0
        %1205 = vmatpush.bf16.msra.mxu0 0
        %1206 = vmatpush.bf16.msra.mxu0 %v1197
        %1207 = vmatmul.bf16.gmra.mxu0 %v1193
        %v1208 = vpop.f32.mrf.mxu0
        %v1209 = vadd.f32 0.0, %v1208
        %v1210 = vpop.f32.mrf.mxu0
        %1211 = vdwg.mxu0
        %v1213 = vunpack.c.l.b16 %v1120
        %v1214 = vpack.c.b16 %v1213, %v1213
        %1215 = vrot.lane.b32.xlu0 %v1214, 120
        %v1216 = vpop.permute.xlu0 %1215
        %v1218 = vunpack.c.l.b16 %v1123
        %v1219 = vpack.c.b16 %v1218, %v1218
        %1220 = vrot.lane.b32.xlu0 %v1219, 120
        %v1221 = vpop.permute.xlu0 %1220
        %v1223 = vsel %vm1129, %v1216, 0
        %v1226 = vsel %vm1129, %v1221, 0
        %1228 = vmatpush.bf16.xpose.msra.mxu0 0
        %1229 = vmatpush.bf16.xpose.msra.mxu0 0
        %1230 = vmatpush.bf16.xpose.msra.mxu0 0
        %1231 = vmatpush.bf16.xpose.msra.mxu0 0
        %1232 = vmatpush.bf16.xpose.msra.mxu0 0
        %1233 = vmatpush.bf16.xpose.msra.mxu0 0
        %1234 = vmatpush.bf16.xpose.msra.mxu0 0
        %1235 = vmatpush.bf16.xpose.msra.mxu0 %v1226
        %1236 = vmatmul.bf16.gmra.mxu0 %v1223
        %v1237 = vpop.f32.mrf.mxu0
        %v1238 = vadd.f32 %v1127, %v1237
        %v1239 = vpop.f32.mrf.mxu0
        %1240 = vdwg.mxu0
        %v1242 = vunpack.c.l.b16 %v1122
        %v1243 = vpack.c.b16 %v1242, %v1242
        %1244 = vrot.lane.b32.xlu0 %v1243, 120
        %v1245 = vpop.permute.xlu0 %1244
        %v1247 = vunpack.c.l.b16 %v1124
        %v1248 = vpack.c.b16 %v1247, %v1247
        %1249 = vrot.lane.b32.xlu0 %v1248, 120
        %v1250 = vpop.permute.xlu0 %1249
        %v1252 = vsel %vm1129, %v1245, 0
        %v1255 = vsel %vm1129, %v1250, 0
        %1257 = vmatpush.bf16.xpose.msra.mxu0 0
        %1258 = vmatpush.bf16.xpose.msra.mxu0 0
        %1259 = vmatpush.bf16.xpose.msra.mxu0 0
        %1260 = vmatpush.bf16.xpose.msra.mxu0 0
        %1261 = vmatpush.bf16.xpose.msra.mxu0 0
        %1262 = vmatpush.bf16.xpose.msra.mxu0 0
        %1263 = vmatpush.bf16.xpose.msra.mxu0 0
        %1264 = vmatpush.bf16.xpose.msra.mxu0 %v1255
        %1265 = vmatmul.bf16.gmra.mxu0 %v1252
        %v1266 = vpop.f32.mrf.mxu0
        %v1267 = vadd.f32 %v1127, %v1266
        %v1268 = vpop.f32.mrf.mxu0
        %1269 = vdwg.mxu0
        %v1270 = vsel %vm1129, %v1238, -inf
        %1271 = vmax.xlane.f32.xlu0 %v1270
        %v1272 = vpop.xlane.xlu0 %1271
        %v1273 = vsub.f32 %v1238, %v1272
        %v1274 = vmul.f32 %v1273, 1.442695
        %v1275 = vpow.pop %v1274
        %v1276 = vsel %vm1129, %v1275, 0.0
        %1277 = vadd.xlane.f32.xlu0 %v1276
        %v1278 = vpop.xlane.xlu0 %1277
        %v1279 = vrcp.pop %v1278
        %v1280 = vmul.f32 %v1275, %v1279
        %v1281 = vsel %vm1129, %v1267, -inf
        %1282 = vmax.xlane.f32.xlu0 %v1281
        %v1283 = vpop.xlane.xlu0 %1282
        %v1284 = vsub.f32 %v1267, %v1283
        %v1285 = vmul.f32 %v1284, 1.442695
        %v1286 = vpow.pop %v1285
        %v1287 = vsel %vm1129, %v1286, 0.0
        %1288 = vadd.xlane.f32.xlu0 %v1287
        %v1289 = vpop.xlane.xlu0 %1288
        %v1290 = vrcp.pop %v1289
        %v1291 = vmul.f32 %v1286, %v1290
        %v1292 = vadd.f32 %v1280, %v1291
        %v1293 = vpack.c.bf16 %v1292, %v1292
        %v1295 = vunpack.c.l.b16 %v1125
        %v1296 = vpack.c.b16 %v1295, %v1295
        %1297 = vrot.lane.b32.xlu0 %v1296, 120
        %v1298 = vpop.permute.xlu0 %1297
        %v1300 = vsel %vm1129, %v1293, 0
        %v1303 = vsel %vm1195, %v1298, 0
        %1305 = vmatpush.bf16.msra.mxu0 0
        %1306 = vmatpush.bf16.msra.mxu0 0
        %1307 = vmatpush.bf16.msra.mxu0 0
        %1308 = vmatpush.bf16.msra.mxu0 0
        %1309 = vmatpush.bf16.msra.mxu0 0
        %1310 = vmatpush.bf16.msra.mxu0 0
        %1311 = vmatpush.bf16.msra.mxu0 0
        %1312 = vmatpush.bf16.msra.mxu0 %v1303
        %1313 = vmatmul.bf16.gmra.mxu0 %v1300
        %v1314 = vpop.f32.mrf.mxu0
        %v1315 = vadd.f32 0.0, %v1314
        %v1316 = vpop.f32.mrf.mxu0
        %1317 = vdwg.mxu0
        %1318 = vrot.lane.b32.xlu0 %v1214, 112
        %v1319 = vpop.permute.xlu0 %1318
        %1320 = vrot.lane.b32.xlu0 %v1219, 112
        %v1321 = vpop.permute.xlu0 %1320
        %v1323 = vsel %vm1129, %v1319, 0
        %v1326 = vsel %vm1129, %v1321, 0
        %1328 = vmatpush.bf16.xpose.msra.mxu0 0
        %1329 = vmatpush.bf16.xpose.msra.mxu0 0
        %1330 = vmatpush.bf16.xpose.msra.mxu0 0
        %1331 = vmatpush.bf16.xpose.msra.mxu0 0
        %1332 = vmatpush.bf16.xpose.msra.mxu0 0
        %1333 = vmatpush.bf16.xpose.msra.mxu0 0
        %1334 = vmatpush.bf16.xpose.msra.mxu0 0
        %1335 = vmatpush.bf16.xpose.msra.mxu0 %v1326
        %1336 = vmatmul.bf16.gmra.mxu0 %v1323
        %v1337 = vpop.f32.mrf.mxu0
        %v1338 = vadd.f32 %v1127, %v1337
        %v1339 = vpop.f32.mrf.mxu0
        %1340 = vdwg.mxu0
        %1341 = vrot.lane.b32.xlu0 %v1243, 112
        %v1342 = vpop.permute.xlu0 %1341
        %1343 = vrot.lane.b32.xlu0 %v1248, 112
        %v1344 = vpop.permute.xlu0 %1343
        %v1346 = vsel %vm1129, %v1342, 0
        %v1349 = vsel %vm1129, %v1344, 0
        %1351 = vmatpush.bf16.xpose.msra.mxu0 0
        %1352 = vmatpush.bf16.xpose.msra.mxu0 0
        %1353 = vmatpush.bf16.xpose.msra.mxu0 0
        %1354 = vmatpush.bf16.xpose.msra.mxu0 0
        %1355 = vmatpush.bf16.xpose.msra.mxu0 0
        %1356 = vmatpush.bf16.xpose.msra.mxu0 0
        %1357 = vmatpush.bf16.xpose.msra.mxu0 0
        %1358 = vmatpush.bf16.xpose.msra.mxu0 %v1349
        %1359 = vmatmul.bf16.gmra.mxu0 %v1346
        %v1360 = vpop.f32.mrf.mxu0
        %v1361 = vadd.f32 %v1127, %v1360
        %v1362 = vpop.f32.mrf.mxu0
        %1363 = vdwg.mxu0
        %v1364 = vsel %vm1129, %v1338, -inf
        %1365 = vmax.xlane.f32.xlu0 %v1364
        %v1366 = vpop.xlane.xlu0 %1365
        %v1367 = vsub.f32 %v1338, %v1366
        %v1368 = vmul.f32 %v1367, 1.442695
        %v1369 = vpow.pop %v1368
        %v1370 = vsel %vm1129, %v1369, 0.0
        %1371 = vadd.xlane.f32.xlu0 %v1370
        %v1372 = vpop.xlane.xlu0 %1371
        %v1373 = vrcp.pop %v1372
        %v1374 = vmul.f32 %v1369, %v1373
        %v1375 = vsel %vm1129, %v1361, -inf
        %1376 = vmax.xlane.f32.xlu0 %v1375
        %v1377 = vpop.xlane.xlu0 %1376
        %v1378 = vsub.f32 %v1361, %v1377
        %v1379 = vmul.f32 %v1378, 1.442695
        %v1380 = vpow.pop %v1379
        %v1381 = vsel %vm1129, %v1380, 0.0
        %1382 = vadd.xlane.f32.xlu0 %v1381
        %v1383 = vpop.xlane.xlu0 %1382
        %v1384 = vrcp.pop %v1383
        %v1385 = vmul.f32 %v1380, %v1384
        %v1386 = vadd.f32 %v1374, %v1385
        %v1387 = vpack.c.bf16 %v1386, %v1386
        %1388 = vrot.lane.b32.xlu0 %v1296, 112
        %v1389 = vpop.permute.xlu0 %1388
        %v1391 = vsel %vm1129, %v1387, 0
        %v1394 = vsel %vm1195, %v1389, 0
        %1396 = vmatpush.bf16.msra.mxu0 0
        %1397 = vmatpush.bf16.msra.mxu0 0
        %1398 = vmatpush.bf16.msra.mxu0 0
        %1399 = vmatpush.bf16.msra.mxu0 0
        %1400 = vmatpush.bf16.msra.mxu0 0
        %1401 = vmatpush.bf16.msra.mxu0 0
        %1402 = vmatpush.bf16.msra.mxu0 0
        %1403 = vmatpush.bf16.msra.mxu0 %v1394
        %1404 = vmatmul.bf16.gmra.mxu0 %v1391
        %v1405 = vpop.f32.mrf.mxu0
        %v1406 = vadd.f32 0.0, %v1405
        %v1407 = vpop.f32.mrf.mxu0
        %1408 = vdwg.mxu0
        %1409 = vrot.lane.b32.xlu0 %v1214, 104
        %v1410 = vpop.permute.xlu0 %1409
        %1411 = vrot.lane.b32.xlu0 %v1219, 104
        %v1412 = vpop.permute.xlu0 %1411
        %v1414 = vsel %vm1129, %v1410, 0
        %v1417 = vsel %vm1129, %v1412, 0
        %1419 = vmatpush.bf16.xpose.msra.mxu0 0
        %1420 = vmatpush.bf16.xpose.msra.mxu0 0
        %1421 = vmatpush.bf16.xpose.msra.mxu0 0
        %1422 = vmatpush.bf16.xpose.msra.mxu0 0
        %1423 = vmatpush.bf16.xpose.msra.mxu0 0
        %1424 = vmatpush.bf16.xpose.msra.mxu0 0
        %1425 = vmatpush.bf16.xpose.msra.mxu0 0
        %1426 = vmatpush.bf16.xpose.msra.mxu0 %v1417
        %1427 = vmatmul.bf16.gmra.mxu0 %v1414
        %v1428 = vpop.f32.mrf.mxu0
        %v1429 = vadd.f32 %v1127, %v1428
        %v1430 = vpop.f32.mrf.mxu0
        %1431 = vdwg.mxu0
        %1432 = vrot.lane.b32.xlu0 %v1243, 104
        %v1433 = vpop.permute.xlu0 %1432
        %1434 = vrot.lane.b32.xlu0 %v1248, 104
        %v1435 = vpop.permute.xlu0 %1434
        %v1437 = vsel %vm1129, %v1433, 0
        %v1440 = vsel %vm1129, %v1435, 0
        %1442 = vmatpush.bf16.xpose.msra.mxu0 0
        %1443 = vmatpush.bf16.xpose.msra.mxu0 0
        %1444 = vmatpush.bf16.xpose.msra.mxu0 0
        %1445 = vmatpush.bf16.xpose.msra.mxu0 0
        %1446 = vmatpush.bf16.xpose.msra.mxu0 0
        %1447 = vmatpush.bf16.xpose.msra.mxu0 0
        %1448 = vmatpush.bf16.xpose.msra.mxu0 0
        %1449 = vmatpush.bf16.xpose.msra.mxu0 %v1440
        %1450 = vmatmul.bf16.gmra.mxu0 %v1437
        %v1451 = vpop.f32.mrf.mxu0
        %v1452 = vadd.f32 %v1127, %v1451
        %v1453 = vpop.f32.mrf.mxu0
        %1454 = vdwg.mxu0
        %v1455 = vsel %vm1129, %v1429, -inf
        %1456 = vmax.xlane.f32.xlu0 %v1455
        %v1457 = vpop.xlane.xlu0 %1456
        %v1458 = vsub.f32 %v1429, %v1457
        %v1459 = vmul.f32 %v1458, 1.442695
        %v1460 = vpow.pop %v1459
        %v1461 = vsel %vm1129, %v1460, 0.0
        %1462 = vadd.xlane.f32.xlu0 %v1461
        %v1463 = vpop.xlane.xlu0 %1462
        %v1464 = vrcp.pop %v1463
        %v1465 = vmul.f32 %v1460, %v1464
        %v1466 = vsel %vm1129, %v1452, -inf
        %1467 = vmax.xlane.f32.xlu0 %v1466
        %v1468 = vpop.xlane.xlu0 %1467
        %v1469 = vsub.f32 %v1452, %v1468
        %v1470 = vmul.f32 %v1469, 1.442695
        %v1471 = vpow.pop %v1470
        %v1472 = vsel %vm1129, %v1471, 0.0
        %1473 = vadd.xlane.f32.xlu0 %v1472
        %v1474 = vpop.xlane.xlu0 %1473
        %v1475 = vrcp.pop %v1474
        %v1476 = vmul.f32 %v1471, %v1475
        %v1477 = vadd.f32 %v1465, %v1476
        %v1478 = vpack.c.bf16 %v1477, %v1477
        %1479 = vrot.lane.b32.xlu0 %v1296, 104
        %v1480 = vpop.permute.xlu0 %1479
        %v1482 = vsel %vm1129, %v1478, 0
        %v1485 = vsel %vm1195, %v1480, 0
        %1487 = vmatpush.bf16.msra.mxu0 0
        %1488 = vmatpush.bf16.msra.mxu0 0
        %1489 = vmatpush.bf16.msra.mxu0 0
        %1490 = vmatpush.bf16.msra.mxu0 0
        %1491 = vmatpush.bf16.msra.mxu0 0
        %1492 = vmatpush.bf16.msra.mxu0 0
        %1493 = vmatpush.bf16.msra.mxu0 0
        %1494 = vmatpush.bf16.msra.mxu0 %v1485
        %1495 = vmatmul.bf16.gmra.mxu0 %v1482
        %v1496 = vpop.f32.mrf.mxu0
        %v1497 = vadd.f32 0.0, %v1496
        %v1498 = vpop.f32.mrf.mxu0
        %1499 = vdwg.mxu0
        %1501 = vrot.lane.b32.xlu0 %v1315, 8
        %v1502 = vpop.permute.xlu0 %1501
        %1505 = vrot.lane.b32.xlu0 %v1406, 16
        %v1506 = vpop.permute.xlu0 %1505
        %1509 = vrot.lane.b32.xlu0 %v1497, 24
        %v1510 = vpop.permute.xlu0 %1509
        %v1512 = vsel %vm1129, %v1209, %v1502
        %vm1513 = vcmask 130048
        %v1514 = vsel %vm1513, %v1512, %v1506
        %vm1515 = vcmask 195584
        %v1516 = vsel %vm1515, %v1514, %v1510
        %v1517 = vld [vmem:[%s742 + $0x5] sm:$0x1]
        %v1518 = vld [vmem:[%s746 + $0x5] sm:$0x1]
        %v1519 = vsel %vm791, %v1516, 0.0
        %1520 = vadd.xlane.f32.xlu0 %v1519
        %v1521 = vpop.xlane.xlu0 %1520
        %v1522 = vmul.f32 %v1521, %v801
        %v1523 = vsub.f32 %v1516, %v1522
        %v1524 = vmul.f32 %v1523, %v1523
        %v1525 = vsel %vm791, %v1524, 0.0
        %1526 = vadd.xlane.f32.xlu0 %v1525
        %v1527 = vpop.xlane.xlu0 %1526
        %v1528 = vmul.f32 %v1527, %v801
        %v1529 = vadd.f32 %v1528, 1e-12
        %v1530 = vrsqrt.pop %v1529
        %v1531 = vmul.f32 %v1530, %v1529
        %v1532 = vmul.f32 %v1531, %v1530
        %v1533 = vmul.f32 0.5, %v1532
        %v1534 = vsub.f32 1.5, %v1533
        %v1535 = vmul.f32 %v1530, %v1534
        %vm1536 = vweird.f32 %v1529
        %vm1537 = vweird.f32 %v1530
        %vm1538 = vmor %vm1536, %vm1537
        %v1539 = vsel %vm1538, %v1530, %v1535
        %v1540 = vmul.f32 %v1523, %v1539
        %v1541 = vperm.slane %v1517, 0
        %v1542 = vmul.f32 %v1540, %v1541
        %v1543 = vperm.slane %v1518, 0
        %v1544 = vadd.f32 %v1542, %v1543
        %v1545 = vpack.c.bf16 %v1544, %v1544
        %s1546 = scalar_lea.vmem %s757, 80
        %v1547 = vld [vmem:[%s1546] sm:$0xf]
        %v1548 = vld [vmem:[%s1546 + $0x4] sm:$0xf]
        %v1549 = vld [vmem:[%s1546 + $0x8] sm:$0xf]
        %v1550 = vld [vmem:[%s1546 + $0xc] sm:$0xf]
        %v1551 = vld [vmem:[%s761 + $0x5] sm:$0x1]
        %v1552 = vperm.slane %v1551, 0
        %v1557 = vunpack.c.l.b16 %v1547
        %v1558 = vunpack.c.l.b16 %v1548
        %v1559 = vunpack.c.l.b16 %v1549
        %v1560 = vunpack.c.l.b16 %v1550
        %v1561 = vpack.c.b16 %v1558, %v1557
        %v1562 = vpack.c.b16 %v1560, %v1559
        %v1566 = vsel %vm791, %v1545, 0
        %1568 = vmatpush.bf16.msra.mxu0 0
        %1569 = vmatpush.bf16.msra.mxu0 0
        %1570 = vmatpush.bf16.msra.mxu0 0
        %1571 = vmatpush.bf16.msra.mxu0 0
        %1572 = vmatpush.bf16.msra.mxu0 0
        %1573 = vmatpush.bf16.msra.mxu0 0
        %1574 = vmatpush.bf16.msra.mxu0 %v1562
        %1575 = vmatpush.bf16.msra.mxu0 %v1561
        %1576 = vmatmul.bf16.gmra.mxu0 %v1566
        %v1577 = vpop.f32.mrf.mxu0
        %v1578 = vadd.f32 %v1552, %v1577
        %v1579 = vpop.f32.mrf.mxu0
        %1580 = vdwg.mxu0
        %v1581 = vadd.f32 %v1578, %v786
        %v1582 = vld [vmem:[%s742 + $0x6] sm:$0x1]
        %v1583 = vld [vmem:[%s746 + $0x6] sm:$0x1]
        %v1584 = vsel %vm791, %v1581, 0.0
        %1585 = vadd.xlane.f32.xlu0 %v1584
        %v1586 = vpop.xlane.xlu0 %1585
        %v1587 = vmul.f32 %v1586, %v801
        %v1588 = vsub.f32 %v1581, %v1587
        %v1589 = vmul.f32 %v1588, %v1588
        %v1590 = vsel %vm791, %v1589, 0.0
        %1591 = vadd.xlane.f32.xlu0 %v1590
        %v1592 = vpop.xlane.xlu0 %1591
        %v1593 = vmul.f32 %v1592, %v801
        %v1594 = vadd.f32 %v1593, 1e-12
        %v1595 = vrsqrt.pop %v1594
        %v1596 = vmul.f32 %v1595, %v1594
        %v1597 = vmul.f32 %v1596, %v1595
        %v1598 = vmul.f32 0.5, %v1597
        %v1599 = vsub.f32 1.5, %v1598
        %v1600 = vmul.f32 %v1595, %v1599
        %vm1601 = vweird.f32 %v1594
        %vm1602 = vweird.f32 %v1595
        %vm1603 = vmor %vm1601, %vm1602
        %v1604 = vsel %vm1603, %v1595, %v1600
        %v1605 = vmul.f32 %v1588, %v1604
        %v1606 = vperm.slane %v1582, 0
        %v1607 = vmul.f32 %v1605, %v1606
        %v1608 = vperm.slane %v1583, 0
        %v1609 = vadd.f32 %v1607, %v1608
        %v1610 = vpack.c.bf16 %v1609, %v1609
        %v1611 = vld [vmem:[%s766] sm:$0xf]
        %v1612 = vld [vmem:[%s766 + $0x4] sm:$0xf]
        %v1613 = vld [vmem:[%s766 + $0x8] sm:$0xf]
        %v1614 = vld [vmem:[%s766 + $0xc] sm:$0xf]
        %v1615 = vld [vmem:[%s769] sm:$0x1]
        %v1617 = vperm.slane %v1615, 0
        %v1623 = vunpack.c.l.b16 %v1611
        %v1624 = vunpack.c.l.b16 %v1612
        %v1625 = vunpack.c.l.b16 %v1613
        %v1626 = vunpack.c.l.b16 %v1614
        %v1627 = vpack.c.b16 %v1624, %v1623
        %v1628 = vpack.c.b16 %v1626, %v1625
        %v1632 = vsel %vm791, %v1610, 0
        %1634 = vmatpush.bf16.msra.mxu0 0
        %1635 = vmatpush.bf16.msra.mxu0 0
        %1636 = vmatpush.bf16.msra.mxu0 0
        %1637 = vmatpush.bf16.msra.mxu0 0
        %1638 = vmatpush.bf16.msra.mxu0 0
        %1639 = vmatpush.bf16.msra.mxu0 0
        %1640 = vmatpush.bf16.msra.mxu0 %v1628
        %1641 = vmatpush.bf16.msra.mxu0 %v1627
        %1642 = vmatmul.bf16.gmra.mxu0 %v1632
        %v1643 = vpop.f32.mrf.mxu0
        %v1644 = vadd.f32 %v1617, %v1643
        %v1645 = vpop.f32.mrf.mxu0
        %1646 = vdwg.mxu0
        %v1647 = vmul.f32 %v1644, 0.5
        %v1648 = vmul.f32 %v1644, 0.044715
        %v1649 = vmul.f32 %v1648, %v1644
        %v1650 = vmul.f32 %v1649, %v1644
        %v1651 = vadd.f32 %v1644, %v1650
        %v1652 = vmul.f32 %v1651, 0.7978846
        %v1653 = vtanh.pop %v1652
        %v1654 = vadd.f32 %v1653, 1.0
        %v1655 = vmul.f32 %v1647, %v1654
        %v1656 = vld [vmem:[%s749] sm:$0x1]
        %v1657 = vld [vmem:[%s752] sm:$0x1]
        %vm1658 = vcmask 523264
        %v1659 = vsel %vm1658, %v1655, 0.0
        %1660 = vadd.xlane.f32.xlu0 %v1659
        %v1661 = vpop.xlane.xlu0 %1660
        %v1662 = vrcp.pop 64.0
        %v1663 = vmul.f32 64.0, %v1662
        %v1664 = vsub.f32 1.0, %v1663
        %v1665 = vmul.f32 %v1662, %v1664
        %v1666 = vadd.f32 %v1662, %v1665
        %vm1667 = vweird.f32 %v1662
        %v1668 = vsel %vm1667, %v1662, %v1666
        %v1669 = vmul.f32 %v1661, %v1668
        %v1670 = vsub.f32 %v1655, %v1669
        %v1671 = vmul.f32 %v1670, %v1670
        %v1672 = vsel %vm1658, %v1671, 0.0
        %1673 = vadd.xlane.f32.xlu0 %v1672
        %v1674 = vpop.xlane.xlu0 %1673
        %v1675 = vmul.f32 %v1674, %v1668
        %v1676 = vadd.f32 %v1675, 1e-12
        %v1677 = vrsqrt.pop %v1676
        %v1678 = vmul.f32 %v1677, %v1676
        %v1679 = vmul.f32 %v1678, %v1677
        %v1680 = vmul.f32 0.5, %v1679
        %v1681 = vsub.f32 1.5, %v1680
        %v1682 = vmul.f32 %v1677, %v1681
        %vm1683 = vweird.f32 %v1676
        %vm1684 = vweird.f32 %v1677
        %vm1685 = vmor %vm1683, %vm1684
        %v1686 = vsel %vm1685, %v1677, %v1682
        %v1687 = vmul.f32 %v1670, %v1686
        %v1689 = vperm.slane %v1656, 0
        %v1691 = vmul.f32 %v1687, %v1689
        %v1693 = vperm.slane %v1657, 0
        %v1695 = vadd.f32 %v1691, %v1693
        %v1696 = vpack.c.bf16 %v1695, %v1695
        %v1697 = vld [vmem:[%s774] sm:$0xf]
        %v1698 = vld [vmem:[%s774 + $0x4] sm:$0xf]
        %v1699 = vld [vmem:[%s774 + $0x8] sm:$0xf]
        %v1700 = vld [vmem:[%s774 + $0xc] sm:$0xf]
        %v1701 = vld [vmem:[%s774 + $0x10] sm:$0xf]
        %v1702 = vld [vmem:[%s774 + $0x14] sm:$0xf]
        %v1703 = vld [vmem:[%s774 + $0x18] sm:$0xf]
        %v1704 = vld [vmem:[%s774 + $0x1c] sm:$0xf]
        %v1705 = vld [vmem:[%s777] sm:$0x1]
        %v1707 = vperm.slane %v1705, 0
        %v1717 = vunpack.c.l.b16 %v1697
        %v1718 = vunpack.c.l.b16 %v1698
        %v1719 = vunpack.c.l.b16 %v1699
        %v1720 = vunpack.c.l.b16 %v1700
        %v1721 = vunpack.c.l.b16 %v1701
        %v1722 = vunpack.c.l.b16 %v1702
        %v1723 = vunpack.c.l.b16 %v1703
        %v1724 = vunpack.c.l.b16 %v1704
        %v1725 = vpack.c.b16 %v1718, %v1717
        %v1726 = vpack.c.b16 %v1720, %v1719
        %v1727 = vpack.c.b16 %v1722, %v1721
        %v1728 = vpack.c.b16 %v1724, %v1723
        %v1734 = vsel %vm1658, %v1696, 0
        %1736 = vmatpush.bf16.msra.mxu0 0
        %1737 = vmatpush.bf16.msra.mxu0 0
        %1738 = vmatpush.bf16.msra.mxu0 0
        %1739 = vmatpush.bf16.msra.mxu0 0
        %1740 = vmatpush.bf16.msra.mxu0 %v1728
        %1741 = vmatpush.bf16.msra.mxu0 %v1727
        %1742 = vmatpush.bf16.msra.mxu0 %v1726
        %1743 = vmatpush.bf16.msra.mxu0 %v1725
        %1744 = vmatmul.bf16.gmra.mxu0 %v1734
        %v1745 = vpop.f32.mrf.mxu0
        %v1746 = vadd.f32 %v1707, %v1745
        %v1747 = vpop.f32.mrf.mxu0
        %1748 = vdwg.mxu0
        %v1749 = vadd.f32 %v1746, %v1581
        %1750 = vst.msk [vmem:[#allocation2] sm:$0xff] %vm791, %v1749
        // Predicated region
        $region89: #{dual_qk_former.1} parent=83 // pred_check
          %p1751 = pneg %p779
        $region90: #{dual_qk_former.1} parent=83 // pred_check_branch
          %1753 = sbr.rel (%p1751) target = $region92
        $region91: #{dual_qk_former.1} parent=83 // pred_region
          %1754 = vst.msk [vmem:[#allocation3] sm:$0xff] %vm791, %v1749
        $region92: #{dual_qk_former.1} parent=83 // pred_fallthru
          _
        %p1755 = scmp.ne.s32.totalorder %s35, 0
        // Predicated region
        $region93: #{dual_qk_former.1} parent=83 // pred_check
          %p1756 = pneg %p1755
        $region94: #{dual_qk_former.1} parent=83 // pred_check_branch
          %1758 = sbr.rel (%p1756) target = $region96
        $region95: #{dual_qk_former.1} parent=83 // pred_region
          %v1759 = vld [vmem:[#allocation3] sm:$0xff]
          %v1760 = vadd.f32 %v1759, %v1749
          %1761 = vst.msk [vmem:[#allocation3] sm:$0xff] %vm791, %v1760
        $region96: #{dual_qk_former.1} parent=83 // pred_fallthru
          _
        %p1762 = scmp.eq.s32.totalorder %s35, 1
        // Predicated region
        $region97: #{dual_qk_former.1} parent=83 // pred_check
          %p1763 = pneg %p1762
        $region98: #{dual_qk_former.1} parent=83 // pred_check_branch
          %1765 = sbr.rel (%p1763) target = $region100
        $region99: #{dual_qk_former.1} parent=83 // pred_region
          %v1766 = vld [vmem:[#allocation3] sm:$0xff]
          %v1767 = vmul.f32 %v1766, 0.5
          %1768 = vst.msk [vmem:[%s715] sm:$0xff] %vm791, %v1767
        $region100: #{dual_qk_former.1} parent=83 // pred_fallthru
          _
        %s1769 = sand.u32 %s466, 1
        %s1770 = scalar_lea.sflag [#allocation5], %s1769
        %s1771 = sand.u32 %s466, 1
        %s1772 = smul.addr %s1771, 8
        %s1773 = scalar_lea.vmem [#allocation4], %s1772
        // Predicated region
        $region101: #{dual_qk_former.1} parent=83 // pred_check
          %p1774 = pneg %p476
        $region102: #{dual_qk_former.1} parent=83 // pred_check_branch
          %1776 = sbr.rel (%p1774) target = $region104
        $region103: #{dual_qk_former.1} parent=83 // pred_region
          %1778 = vsyncadd %s1770, 0
          %s1779 = smul.addr %s34, 8
          %s1780 = scalar_lea.hbm %s16, %s1779
          %s1782 = sshll.u32 %s1773, 4
          %s1783 = int_to_ptr.vmem [resolvable:$true] %s1782
          %s1784 = sshll.u32 %s1780, 4
          %s1785 = int_to_ptr.hbm [resolvable:$true] %s1784
          %1787 = dma.vmem_to_hbm [thread:$0]  %s1783, 128, %s1785, %s1770
        $region104: #{dual_qk_former.1} parent=83 // pred_fallthru
          _
      $region84: #{dual_qk_former.1} parent=5 // pred_fallthru
        _
      %p1788 = scmp.le.s32.totalorder 2, %s25
      // Predicated region
      $region105: #{dual_qk_former.1} parent=5 // pred_check
        %p1789 = pneg %p1788
      $region106: #{dual_qk_former.1} parent=5 // pred_check_branch
        %1791 = sbr.rel (%p1789) target = $region108
      $region107: #{dual_qk_former.1} parent=5 // pred_region
        %s1792 = ssub.s32 %s25, 2
        // Predicated region
        $region109: #{dual_qk_former.1} parent=107 // pred_check
          %p1793 = pneg %p482
        $region110: #{dual_qk_former.1} parent=107 // pred_check_branch
          %1795 = sbr.rel (%p1793) target = $region112
        $region111: #{dual_qk_former.1} parent=107 // pred_region
          %s1796 = sand.u32 %s467, 1
          %s1797 = scalar_lea.sflag [#allocation5], %s1796
          %s1798 = sand.u32 %s467, 1
          %s1799 = smul.addr %s1798, 8
          %s1800 = scalar_lea.vmem [#allocation4], %s1799
          %1802 = dma.done %s1797, 128
        $region112: #{dual_qk_former.1} parent=107 // pred_fallthru
          _
      $region108: #{dual_qk_former.1} parent=5 // pred_fallthru
        _
    $region6: #{dual_qk_former.1} parent=1 // loop_footer
      %s29 = sadd.s32 1, %s25
    $region7: #{dual_qk_former.1} parent=1 // loop_footer_branch
      %24 = sbr.rel target = $region3
    $region8: #{dual_qk_former.1} parent=1 // loop_exit
      _
    %1803 = vsyncpa [#allocation5], 1
    %s1804 = scalar_lea.sflag [#allocation5], 1
    %1805 = vsyncpa %s1804, 1

</llo_original>
